<compile_context>
chip_gen: v5e
topology: v5e:2x2
jax: 0.10.0
libtpu: 0.0.40
codegen_flags: <defaults>
</compile_context>

<pallas_src>
import jax
import jax.numpy as jnp
import numpy as np
from jax.experimental import pallas as pl
from jax.experimental.pallas import tpu as pltpu


def _gru_update(xi, h, w_hh, b_hh, hidden):
    """PyTorch GRUCell update given the precomputed input projection xi = x @ W_ih + b_ih.

    Gate order is [r, z, n] (PyTorch convention); h stays f32, the hidden matmul runs in bf16
    with f32 accumulation.
    """
    hh = jnp.dot(h.astype(jnp.bfloat16), w_hh, preferred_element_type=jnp.float32) + b_hh
    r = jax.nn.sigmoid(xi[:, :hidden] + hh[:, :hidden])
    z = jax.nn.sigmoid(xi[:, hidden:2 * hidden] + hh[:, hidden:2 * hidden])
    n = jnp.tanh(xi[:, 2 * hidden:3 * hidden] + r * hh[:, 2 * hidden:3 * hidden])
    return (1.0 - z) * n + z * h


def _dialogue_rnn_cell_kernel(
    u_ref, qmask_ref, g_hist_ref, q0_ref, e0_ref,
    wg_ih_u_ref, wg_ih_q_ref, wg_hh_ref, bg_ih_ref, bg_hh_ref,
    w_att_ref,
    wp_ih_u_ref, wp_ih_c_ref, wp_hh_ref, bp_ih_ref, bp_hh_ref,
    we_ih_ref, we_hh_ref, be_ih_ref, be_hh_ref,
    g_out_ref, q_out_ref, e_out_ref, alpha_out_ref,
):
    B = u_ref.shape[0]
    P = qmask_ref.shape[1]
    T = g_hist_ref.shape[0]
    D_g = g_hist_ref.shape[2]
    D_p = q0_ref.shape[2]
    D_e = e0_ref.shape[1]

    U = u_ref[...]                                   # (B, D_m) f32
    U_bf = U.astype(jnp.bfloat16)
    qmask = qmask_ref[...]                           # (B, P) f32

    # ---- party selection: one-hot of the (first) argmax over parties ----------------------
    col = jax.lax.broadcasted_iota(jnp.int32, (B, P), 1).astype(jnp.float32)
    mx = jnp.max(qmask, axis=1, keepdims=True)
    cand = jnp.where(qmask == mx, col, float(P))
    first = jnp.min(cand, axis=1, keepdims=True)
    sel = (col == first).astype(jnp.float32)         # (B, P) one-hot of argmax(qmask, 1)

    q0s = [q0_ref[p] for p in range(P)]              # each (B, D_p) f32
    q0_sel = sel[:, 0:1] * q0s[0]
    for p in range(1, P):
        q0_sel = q0_sel + sel[:, p:p + 1] * q0s[p]

    # ---- g_cell: GRU([U ; q0_sel], g_hist[-1])   (concat split into two matmuls) ----------
    g_hist_ts = [g_hist_ref[t] for t in range(T)]    # each (B, D_g) f32
    g_prev = g_hist_ts[T - 1]
    xi_g = (jnp.dot(U_bf, wg_ih_u_ref[...], preferred_element_type=jnp.float32)
            + jnp.dot(q0_sel.astype(jnp.bfloat16), wg_ih_q_ref[...],
                      preferred_element_type=jnp.float32)
            + bg_ih_ref[...])
    g_ = _gru_update(xi_g, g_prev, wg_hh_ref[...], bg_hh_ref[...], D_g)

    # ---- SimpleAttention over g_hist: softmax over the T history steps (all 2-D, f32) -----
    w_att = w_att_ref[...]                           # (1, D_g)
    scores = [jnp.sum(g_t * w_att, axis=-1, keepdims=True) for g_t in g_hist_ts]  # (B,1) each
    m = scores[0]
    for t in range(1, T):
        m = jnp.maximum(m, scores[t])
    exps = [jnp.exp(s - m) for s in scores]
    denom = exps[0]
    for t in range(1, T):
        denom = denom + exps[t]
    inv = 1.0 / denom
    c_ = jnp.zeros((B, D_g), jnp.float32)
    for t in range(T):
        a_t = exps[t] * inv                          # (B, 1)
        alpha_out_ref[:, t:t + 1] = a_t
        c_ = c_ + a_t * g_hist_ts[t]                 # attention pooling

    # ---- p_cell: shared input projection (identical for every party), per-party hidden ----
    xi_p = (jnp.dot(U_bf, wp_ih_u_ref[...], preferred_element_type=jnp.float32)
            + jnp.dot(c_.astype(jnp.bfloat16), wp_ih_c_ref[...],
                      preferred_element_type=jnp.float32)
            + bp_ih_ref[...])                        # (B, 3*D_p)
    wp_hh = wp_hh_ref[...]
    bp_hh = bp_hh_ref[...]

    q_sel_new = jnp.zeros((B, D_p), jnp.float32)
    for p in range(P):
        qs_p = _gru_update(xi_p, q0s[p], wp_hh, bp_hh, D_p)   # dropout = identity (eval)
        mask_p = qmask[:, p:p + 1]
        q_p = q0s[p] * (1.0 - mask_p) + qs_p * mask_p         # listener_state=False: ql_ = q0
        q_out_ref[p] = q_p
        q_sel_new = q_sel_new + sel[:, p:p + 1] * q_p

    # ---- e_cell: GRU(q_[b, argmax(qmask)], e0) ---------------------------------------------
    xi_e = (jnp.dot(q_sel_new.astype(jnp.bfloat16), we_ih_ref[...],
                    preferred_element_type=jnp.float32) + be_ih_ref[...])
    e_ = _gru_update(xi_e, e0_ref[...], we_hh_ref[...], be_hh_ref[...], D_e)

    g_out_ref[...] = g_
    e_out_ref[...] = e_


def dialogue_rnn_cell_forward(U, qmask, g_hist, q0, e0, params):
    """Fused DialogueRNNCell step. Requires non-empty g_hist/e0 (first-step branch is the
    caller's job).  Returns (g_, q_, e_, alpha) with the PyTorch module's shapes."""
    B, D_m = U.shape
    P = qmask.shape[1]
    T, _, D_g = g_hist.shape
    D_p = q0.shape[2]
    D_e = e0.shape[1]
    bf = jnp.bfloat16

    args = (
        U.astype(jnp.float32),
        qmask.astype(jnp.float32),
        g_hist.astype(jnp.float32),
        jnp.transpose(q0, (1, 0, 2)).astype(jnp.float32),        # (P, B, D_p) party-major
        e0.astype(jnp.float32),
        # g_cell: input weight pre-split at the [U ; q0_sel] concat boundary, stored bf16
        params["wg_ih"][:D_m].astype(bf), params["wg_ih"][D_m:].astype(bf),
        params["wg_hh"].astype(bf),
        params["bg_ih"].reshape(1, -1), params["bg_hh"].reshape(1, -1),
        # SimpleAttention scalar weight (D_g -> 1, no bias)
        params["w_att"].reshape(1, D_g),
        # p_cell: input weight pre-split at the [U ; c_] concat boundary
        params["wp_ih"][:D_m].astype(bf), params["wp_ih"][D_m:].astype(bf),
        params["wp_hh"].astype(bf),
        params["bp_ih"].reshape(1, -1), params["bp_hh"].reshape(1, -1),
        # e_cell
        params["we_ih"].astype(bf), params["we_hh"].astype(bf),
        params["be_ih"].reshape(1, -1), params["be_hh"].reshape(1, -1),
    )
    out_shape = (
        jax.ShapeDtypeStruct((B, D_g), jnp.float32),     # g_
        jax.ShapeDtypeStruct((P, B, D_p), jnp.float32),  # q_ (party-major)
        jax.ShapeDtypeStruct((B, D_e), jnp.float32),     # e_
        jax.ShapeDtypeStruct((B, T), jnp.float32),       # alpha (softmax over history)
    )
    g_, q_pbd, e_, alpha_bt = pl.pallas_call(
        _dialogue_rnn_cell_kernel,
        out_shape=out_shape,
        in_specs=[pl.BlockSpec(memory_space=pltpu.MemorySpace.VMEM) for _ in args],
        out_specs=tuple(pl.BlockSpec(memory_space=pltpu.MemorySpace.VMEM) for _ in out_shape),
    )(*args)
    q_ = jnp.transpose(q_pbd, (1, 0, 2))                 # (B, P, D_p)
    alpha = alpha_bt[:, None, :]                         # (B, 1, T), like the PyTorch module
    return g_, q_, e_, alpha


def init_params(key, D_m, D_g, D_p, D_e):
    """Deterministic synthetic parameters matching the PyTorch module's shapes
    (GRU weights stored transposed (in, 3H), gate order [r, z, n])."""
    ks = jax.random.split(key, 13)
    s = 0.1
    mat = lambda k, shape: jax.random.normal(k, shape, jnp.float32) * s
    return dict(
        # g_cell: nn.GRUCell(D_m + D_p, D_g)
        wg_ih=mat(ks[0], (D_m + D_p, 3 * D_g)), wg_hh=mat(ks[1], (D_g, 3 * D_g)),
        bg_ih=mat(ks[2], (3 * D_g,)), bg_hh=mat(ks[3], (3 * D_g,)),
        # p_cell: nn.GRUCell(D_m + D_g, D_p)
        wp_ih=mat(ks[4], (D_m + D_g, 3 * D_p)), wp_hh=mat(ks[5], (D_p, 3 * D_p)),
        bp_ih=mat(ks[6], (3 * D_p,)), bp_hh=mat(ks[7], (3 * D_p,)),
        # e_cell: nn.GRUCell(D_p, D_e)
        we_ih=mat(ks[8], (D_p, 3 * D_e)), we_hh=mat(ks[9], (D_e, 3 * D_e)),
        be_ih=mat(ks[10], (3 * D_e,)), be_hh=mat(ks[11], (3 * D_e,)),
        # SimpleAttention(D_g): nn.Linear(D_g, 1, bias=False)
        w_att=mat(ks[12], (D_g,)),
    )


def _gru_ref(x, h, w_ih, w_hh, b_ih, b_hh):
    hidden = h.shape[1]
    xi = x @ w_ih + b_ih
    hh = h @ w_hh + b_hh
    r = jax.nn.sigmoid(xi[:, :hidden] + hh[:, :hidden])
    z = jax.nn.sigmoid(xi[:, hidden:2 * hidden] + hh[:, hidden:2 * hidden])
    n = jnp.tanh(xi[:, 2 * hidden:] + r * hh[:, 2 * hidden:])
    return (1.0 - z) * n + z * h


def reference_forward(U, qmask, g_hist, q0, e0, p):
    """Pure-JAX f32 mirror of DialogueRNNCell.forward (eval, listener_state=False,
    context_attention='simple', non-empty g_hist / e0) for the correctness check."""
    B, Pn = qmask.shape
    qm_idx = jnp.argmax(qmask, axis=1)
    q0_sel = q0[jnp.arange(B), qm_idx]
    g_ = _gru_ref(jnp.concatenate([U, q0_sel], axis=1), g_hist[-1],
                  p["wg_ih"], p["wg_hh"], p["bg_ih"], p["bg_hh"])
    scale = jnp.einsum("tbd,d->tb", g_hist, p["w_att"])
    alpha_tb = jax.nn.softmax(scale, axis=0)
    c_ = jnp.einsum("tb,tbd->bd", alpha_tb, g_hist)
    alpha = jnp.transpose(alpha_tb)[:, None, :]
    U_c = jnp.concatenate([U, c_], axis=1)
    U_c_exp = jnp.broadcast_to(U_c[:, None, :], (B, Pn, U_c.shape[1])).reshape(B * Pn, -1)
    qs = _gru_ref(U_c_exp, q0.reshape(B * Pn, -1),
                  p["wp_ih"], p["wp_hh"], p["bp_ih"], p["bp_hh"]).reshape(B, Pn, -1)
    q_ = q0 * (1.0 - qmask[:, :, None]) + qs * qmask[:, :, None]
    q_sel = q_[jnp.arange(B), qm_idx]
    e_ = _gru_ref(q_sel, e0, p["we_ih"], p["we_hh"], p["be_ih"], p["be_hh"])
    return g_, q_, e_, alpha


if __name__ == "__main__":
    # Small shapes consistent with the module's forward (batch, parties, t-1 history, dims).
    B, P, T = 4, 2, 8
    D_m = D_g = D_p = D_e = 32

    key = jax.random.PRNGKey(0)
    ku, kg, k0, ke, kmask, kp = jax.random.split(key, 6)

    U = jax.random.normal(ku, (B, D_m), jnp.float32)
    speaker = jax.random.randint(kmask, (B,), 0, P)
    qmask = jax.nn.one_hot(speaker, P, dtype=jnp.float32)     # one-hot speaker mask
    g_hist = jax.random.normal(kg, (T, B, D_g), jnp.float32)  # previous global states
    q0 = jax.random.normal(k0, (B, P, D_p), jnp.float32)
    e0 = jax.random.normal(ke, (B, D_e), jnp.float32)

    params = init_params(kp, D_m, D_g, D_p, D_e)

    g_, q_, e_, alpha = dialogue_rnn_cell_forward(U, qmask, g_hist, q0, e0, params)
    g_, q_, e_, alpha = jax.block_until_ready((g_, q_, e_, alpha))

    rg, rq, re, ralpha = reference_forward(U, qmask, g_hist, q0, e0, params)
    np.testing.assert_allclose(np.asarray(g_), np.asarray(rg), rtol=5e-2, atol=3e-2)
    np.testing.assert_allclose(np.asarray(q_), np.asarray(rq), rtol=5e-2, atol=3e-2)
    np.testing.assert_allclose(np.asarray(e_), np.asarray(re), rtol=5e-2, atol=3e-2)
    np.testing.assert_allclose(np.asarray(alpha), np.asarray(ralpha), rtol=5e-2, atol=3e-2)
    assert np.allclose(np.asarray(alpha).sum(-1), 1.0, atol=1e-3)
    print("KERNEL_OK")
</pallas_src>

<mosaic_0001>
module attributes {stable_mosaic.version = 11 : i64} {
  func.func @_dialogue_rnn_cell_kernel(%arg0: memref<4x32xf32, #tpu.memory_space<vmem>>, %arg1: memref<4x2xf32, #tpu.memory_space<vmem>>, %arg2: memref<8x4x32xf32, #tpu.memory_space<vmem>>, %arg3: memref<2x4x32xf32, #tpu.memory_space<vmem>>, %arg4: memref<4x32xf32, #tpu.memory_space<vmem>>, %arg5: memref<32x96xbf16, #tpu.memory_space<vmem>>, %arg6: memref<32x96xbf16, #tpu.memory_space<vmem>>, %arg7: memref<32x96xbf16, #tpu.memory_space<vmem>>, %arg8: memref<1x96xf32, #tpu.memory_space<vmem>>, %arg9: memref<1x96xf32, #tpu.memory_space<vmem>>, %arg10: memref<1x32xf32, #tpu.memory_space<vmem>>, %arg11: memref<32x96xbf16, #tpu.memory_space<vmem>>, %arg12: memref<32x96xbf16, #tpu.memory_space<vmem>>, %arg13: memref<32x96xbf16, #tpu.memory_space<vmem>>, %arg14: memref<1x96xf32, #tpu.memory_space<vmem>>, %arg15: memref<1x96xf32, #tpu.memory_space<vmem>>, %arg16: memref<32x96xbf16, #tpu.memory_space<vmem>>, %arg17: memref<32x96xbf16, #tpu.memory_space<vmem>>, %arg18: memref<1x96xf32, #tpu.memory_space<vmem>>, %arg19: memref<1x96xf32, #tpu.memory_space<vmem>>, %arg20: memref<4x32xf32, #tpu.memory_space<vmem>>, %arg21: memref<2x4x32xf32, #tpu.memory_space<vmem>>, %arg22: memref<4x32xf32, #tpu.memory_space<vmem>>, %arg23: memref<4x8xf32, #tpu.memory_space<vmem>>) attributes {dimension_semantics = [], scalar_prefetch = 0 : i64, scratch_operands = 0 : i64, tpu.core_type = #tpu.core_type<tc>} {
    %c0 = arith.constant 0 : index
    %c0_0 = arith.constant 0 : index
    %0 = vector.load %arg0[%c0, %c0_0] : memref<4x32xf32, #tpu.memory_space<vmem>>, vector<4x32xf32>
    %1 = arith.truncf %0 : vector<4x32xf32> to vector<4x32xbf16>
    %c0_1 = arith.constant 0 : index
    %c0_2 = arith.constant 0 : index
    %2 = vector.load %arg1[%c0_1, %c0_2] : memref<4x2xf32, #tpu.memory_space<vmem>>, vector<4x2xf32>
    %3 = tpu.iota {dimensions = array<i32: 1>} : vector<4x2xi32>
    %4 = arith.sitofp %3 : vector<4x2xi32> to vector<4x2xf32>
    %cst = arith.constant dense<0xFF800000> : vector<4xf32>
    %5 = vector.multi_reduction <maximumf>, %2, %cst [1] : vector<4x2xf32> to vector<4xf32>
    %6 = vector.shape_cast %5 : vector<4xf32> to vector<4x1xf32>
    %7 = vector.broadcast %6 : vector<4x1xf32> to vector<4x2xf32>
    %8 = arith.cmpf oeq, %2, %7 : vector<4x2xf32>
    %cst_3 = arith.constant 2.000000e+00 : f32
    %9 = vector.broadcast %cst_3 : f32 to vector<4x2xf32>
    %10 = arith.select %8, %4, %9 : vector<4x2xi1>, vector<4x2xf32>
    %cst_4 = arith.constant dense<0x7F800000> : vector<4xf32>
    %11 = vector.multi_reduction <minimumf>, %10, %cst_4 [1] : vector<4x2xf32> to vector<4xf32>
    %12 = vector.shape_cast %11 : vector<4xf32> to vector<4x1xf32>
    %13 = vector.broadcast %12 : vector<4x1xf32> to vector<4x2xf32>
    %14 = arith.cmpf oeq, %4, %13 : vector<4x2xf32>
    %15 = arith.extui %14 : vector<4x2xi1> to vector<4x2xi32>
    %16 = arith.sitofp %15 : vector<4x2xi32> to vector<4x2xf32>
    %c0_5 = arith.constant 0 : index
    %c0_6 = arith.constant 0 : index
    %c0_7 = arith.constant 0 : index
    %17 = vector.load %arg3[%c0_5, %c0_6, %c0_7] : memref<2x4x32xf32, #tpu.memory_space<vmem>>, vector<1x4x32xf32>
    %18 = vector.shape_cast %17 : vector<1x4x32xf32> to vector<4x32xf32>
    %c1 = arith.constant 1 : index
    %c0_8 = arith.constant 0 : index
    %c0_9 = arith.constant 0 : index
    %19 = vector.load %arg3[%c1, %c0_8, %c0_9] : memref<2x4x32xf32, #tpu.memory_space<vmem>>, vector<1x4x32xf32>
    %20 = vector.shape_cast %19 : vector<1x4x32xf32> to vector<4x32xf32>
    %21 = vector.extract_strided_slice %16 {offsets = [0, 0], sizes = [4, 1], strides = [1, 1]} : vector<4x2xf32> to vector<4x1xf32>
    %22 = vector.broadcast %21 : vector<4x1xf32> to vector<4x32xf32>
    %23 = arith.mulf %22, %18 : vector<4x32xf32>
    %24 = vector.extract_strided_slice %16 {offsets = [0, 1], sizes = [4, 1], strides = [1, 1]} : vector<4x2xf32> to vector<4x1xf32>
    %25 = vector.broadcast %24 : vector<4x1xf32> to vector<4x32xf32>
    %26 = arith.mulf %25, %20 : vector<4x32xf32>
    %27 = arith.addf %23, %26 : vector<4x32xf32>
    %c0_10 = arith.constant 0 : index
    %c0_11 = arith.constant 0 : index
    %c0_12 = arith.constant 0 : index
    %28 = vector.load %arg2[%c0_10, %c0_11, %c0_12] : memref<8x4x32xf32, #tpu.memory_space<vmem>>, vector<1x4x32xf32>
    %29 = vector.shape_cast %28 : vector<1x4x32xf32> to vector<4x32xf32>
    %c1_13 = arith.constant 1 : index
    %c0_14 = arith.constant 0 : index
    %c0_15 = arith.constant 0 : index
    %30 = vector.load %arg2[%c1_13, %c0_14, %c0_15] : memref<8x4x32xf32, #tpu.memory_space<vmem>>, vector<1x4x32xf32>
    %31 = vector.shape_cast %30 : vector<1x4x32xf32> to vector<4x32xf32>
    %c2 = arith.constant 2 : index
    %c0_16 = arith.constant 0 : index
    %c0_17 = arith.constant 0 : index
    %32 = vector.load %arg2[%c2, %c0_16, %c0_17] : memref<8x4x32xf32, #tpu.memory_space<vmem>>, vector<1x4x32xf32>
    %33 = vector.shape_cast %32 : vector<1x4x32xf32> to vector<4x32xf32>
    %c3 = arith.constant 3 : index
    %c0_18 = arith.constant 0 : index
    %c0_19 = arith.constant 0 : index
    %34 = vector.load %arg2[%c3, %c0_18, %c0_19] : memref<8x4x32xf32, #tpu.memory_space<vmem>>, vector<1x4x32xf32>
    %35 = vector.shape_cast %34 : vector<1x4x32xf32> to vector<4x32xf32>
    %c4 = arith.constant 4 : index
    %c0_20 = arith.constant 0 : index
    %c0_21 = arith.constant 0 : index
    %36 = vector.load %arg2[%c4, %c0_20, %c0_21] : memref<8x4x32xf32, #tpu.memory_space<vmem>>, vector<1x4x32xf32>
    %37 = vector.shape_cast %36 : vector<1x4x32xf32> to vector<4x32xf32>
    %c5 = arith.constant 5 : index
    %c0_22 = arith.constant 0 : index
    %c0_23 = arith.constant 0 : index
    %38 = vector.load %arg2[%c5, %c0_22, %c0_23] : memref<8x4x32xf32, #tpu.memory_space<vmem>>, vector<1x4x32xf32>
    %39 = vector.shape_cast %38 : vector<1x4x32xf32> to vector<4x32xf32>
    %c6 = arith.constant 6 : index
    %c0_24 = arith.constant 0 : index
    %c0_25 = arith.constant 0 : index
    %40 = vector.load %arg2[%c6, %c0_24, %c0_25] : memref<8x4x32xf32, #tpu.memory_space<vmem>>, vector<1x4x32xf32>
    %41 = vector.shape_cast %40 : vector<1x4x32xf32> to vector<4x32xf32>
    %c7 = arith.constant 7 : index
    %c0_26 = arith.constant 0 : index
    %c0_27 = arith.constant 0 : index
    %42 = vector.load %arg2[%c7, %c0_26, %c0_27] : memref<8x4x32xf32, #tpu.memory_space<vmem>>, vector<1x4x32xf32>
    %43 = vector.shape_cast %42 : vector<1x4x32xf32> to vector<4x32xf32>
    %c0_28 = arith.constant 0 : index
    %c0_29 = arith.constant 0 : index
    %44 = vector.load %arg5[%c0_28, %c0_29] : memref<32x96xbf16, #tpu.memory_space<vmem>>, vector<32x96xbf16>
    %cst_30 = arith.constant dense<0.000000e+00> : vector<4x96xf32>
    %45 = tpu.matmul %1, %44, %cst_30 {dimension_numbers = #tpu.dot_dimension_numbers<[1], [0], [0], [1], [0, 0, 1, 1], [], []>} : vector<4x32xbf16>, vector<32x96xbf16>, vector<4x96xf32> -> vector<4x96xf32>
    %46 = arith.truncf %27 : vector<4x32xf32> to vector<4x32xbf16>
    %c0_31 = arith.constant 0 : index
    %c0_32 = arith.constant 0 : index
    %47 = vector.load %arg6[%c0_31, %c0_32] : memref<32x96xbf16, #tpu.memory_space<vmem>>, vector<32x96xbf16>
    %cst_33 = arith.constant dense<0.000000e+00> : vector<4x96xf32>
    %48 = tpu.matmul %46, %47, %cst_33 {dimension_numbers = #tpu.dot_dimension_numbers<[1], [0], [0], [1], [0, 0, 1, 1], [], []>} : vector<4x32xbf16>, vector<32x96xbf16>, vector<4x96xf32> -> vector<4x96xf32>
    %49 = arith.addf %45, %48 : vector<4x96xf32>
    %c0_34 = arith.constant 0 : index
    %c0_35 = arith.constant 0 : index
    %50 = vector.load %arg8[%c0_34, %c0_35] : memref<1x96xf32, #tpu.memory_space<vmem>>, vector<1x96xf32>
    %51 = vector.broadcast %50 : vector<1x96xf32> to vector<4x96xf32>
    %52 = arith.addf %49, %51 : vector<4x96xf32>
    %c0_36 = arith.constant 0 : index
    %c0_37 = arith.constant 0 : index
    %53 = vector.load %arg7[%c0_36, %c0_37] : memref<32x96xbf16, #tpu.memory_space<vmem>>, vector<32x96xbf16>
    %c0_38 = arith.constant 0 : index
    %c0_39 = arith.constant 0 : index
    %54 = vector.load %arg9[%c0_38, %c0_39] : memref<1x96xf32, #tpu.memory_space<vmem>>, vector<1x96xf32>
    %55 = arith.truncf %43 : vector<4x32xf32> to vector<4x32xbf16>
    %cst_40 = arith.constant dense<0.000000e+00> : vector<4x96xf32>
    %56 = tpu.matmul %55, %53, %cst_40 {dimension_numbers = #tpu.dot_dimension_numbers<[1], [0], [0], [1], [0, 0, 1, 1], [], []>} : vector<4x32xbf16>, vector<32x96xbf16>, vector<4x96xf32> -> vector<4x96xf32>
    %57 = vector.broadcast %54 : vector<1x96xf32> to vector<4x96xf32>
    %58 = arith.addf %56, %57 : vector<4x96xf32>
    %59 = vector.extract_strided_slice %52 {offsets = [0, 0], sizes = [4, 32], strides = [1, 1]} : vector<4x96xf32> to vector<4x32xf32>
    %60 = vector.extract_strided_slice %58 {offsets = [0, 0], sizes = [4, 32], strides = [1, 1]} : vector<4x96xf32> to vector<4x32xf32>
    %61 = arith.addf %59, %60 : vector<4x32xf32>
    %62 = arith.negf %61 : vector<4x32xf32>
    %63 = math.exp %62 : vector<4x32xf32>
    %cst_41 = arith.constant 1.000000e+00 : f32
    %64 = vector.broadcast %cst_41 : f32 to vector<4x32xf32>
    %65 = arith.addf %64, %63 : vector<4x32xf32>
    %66 = arith.divf %64, %65 : vector<4x32xf32>
    %67 = vector.extract_strided_slice %52 {offsets = [0, 32], sizes = [4, 32], strides = [1, 1]} : vector<4x96xf32> to vector<4x32xf32>
    %68 = vector.extract_strided_slice %58 {offsets = [0, 32], sizes = [4, 32], strides = [1, 1]} : vector<4x96xf32> to vector<4x32xf32>
    %69 = arith.addf %67, %68 : vector<4x32xf32>
    %70 = arith.negf %69 : vector<4x32xf32>
    %71 = math.exp %70 : vector<4x32xf32>
    %cst_42 = arith.constant 1.000000e+00 : f32
    %72 = vector.broadcast %cst_42 : f32 to vector<4x32xf32>
    %73 = arith.addf %72, %71 : vector<4x32xf32>
    %74 = arith.divf %72, %73 : vector<4x32xf32>
    %75 = vector.extract_strided_slice %52 {offsets = [0, 64], sizes = [4, 32], strides = [1, 1]} : vector<4x96xf32> to vector<4x32xf32>
    %76 = vector.extract_strided_slice %58 {offsets = [0, 64], sizes = [4, 32], strides = [1, 1]} : vector<4x96xf32> to vector<4x32xf32>
    %77 = arith.mulf %66, %76 : vector<4x32xf32>
    %78 = arith.addf %75, %77 : vector<4x32xf32>
    %79 = math.tanh %78 : vector<4x32xf32>
    %cst_43 = arith.constant 1.000000e+00 : f32
    %80 = vector.broadcast %cst_43 : f32 to vector<4x32xf32>
    %81 = arith.subf %80, %74 : vector<4x32xf32>
    %82 = arith.mulf %81, %79 : vector<4x32xf32>
    %83 = arith.mulf %74, %43 : vector<4x32xf32>
    %84 = arith.addf %82, %83 : vector<4x32xf32>
    %c0_44 = arith.constant 0 : index
    %c0_45 = arith.constant 0 : index
    %85 = vector.load %arg10[%c0_44, %c0_45] : memref<1x32xf32, #tpu.memory_space<vmem>>, vector<1x32xf32>
    %86 = vector.broadcast %85 : vector<1x32xf32> to vector<4x32xf32>
    %87 = arith.mulf %29, %86 : vector<4x32xf32>
    %cst_46 = arith.constant dense<0.000000e+00> : vector<4xf32>
    %88 = vector.multi_reduction <add>, %87, %cst_46 [1] : vector<4x32xf32> to vector<4xf32>
    %89 = vector.shape_cast %88 : vector<4xf32> to vector<4x1xf32>
    %90 = vector.broadcast %85 : vector<1x32xf32> to vector<4x32xf32>
    %91 = arith.mulf %31, %90 : vector<4x32xf32>
    %cst_47 = arith.constant dense<0.000000e+00> : vector<4xf32>
    %92 = vector.multi_reduction <add>, %91, %cst_47 [1] : vector<4x32xf32> to vector<4xf32>
    %93 = vector.shape_cast %92 : vector<4xf32> to vector<4x1xf32>
    %94 = vector.broadcast %85 : vector<1x32xf32> to vector<4x32xf32>
    %95 = arith.mulf %33, %94 : vector<4x32xf32>
    %cst_48 = arith.constant dense<0.000000e+00> : vector<4xf32>
    %96 = vector.multi_reduction <add>, %95, %cst_48 [1] : vector<4x32xf32> to vector<4xf32>
    %97 = vector.shape_cast %96 : vector<4xf32> to vector<4x1xf32>
    %98 = vector.broadcast %85 : vector<1x32xf32> to vector<4x32xf32>
    %99 = arith.mulf %35, %98 : vector<4x32xf32>
    %cst_49 = arith.constant dense<0.000000e+00> : vector<4xf32>
    %100 = vector.multi_reduction <add>, %99, %cst_49 [1] : vector<4x32xf32> to vector<4xf32>
    %101 = vector.shape_cast %100 : vector<4xf32> to vector<4x1xf32>
    %102 = vector.broadcast %85 : vector<1x32xf32> to vector<4x32xf32>
    %103 = arith.mulf %37, %102 : vector<4x32xf32>
    %cst_50 = arith.constant dense<0.000000e+00> : vector<4xf32>
    %104 = vector.multi_reduction <add>, %103, %cst_50 [1] : vector<4x32xf32> to vector<4xf32>
    %105 = vector.shape_cast %104 : vector<4xf32> to vector<4x1xf32>
    %106 = vector.broadcast %85 : vector<1x32xf32> to vector<4x32xf32>
    %107 = arith.mulf %39, %106 : vector<4x32xf32>
    %cst_51 = arith.constant dense<0.000000e+00> : vector<4xf32>
    %108 = vector.multi_reduction <add>, %107, %cst_51 [1] : vector<4x32xf32> to vector<4xf32>
    %109 = vector.shape_cast %108 : vector<4xf32> to vector<4x1xf32>
    %110 = vector.broadcast %85 : vector<1x32xf32> to vector<4x32xf32>
    %111 = arith.mulf %41, %110 : vector<4x32xf32>
    %cst_52 = arith.constant dense<0.000000e+00> : vector<4xf32>
    %112 = vector.multi_reduction <add>, %111, %cst_52 [1] : vector<4x32xf32> to vector<4xf32>
    %113 = vector.shape_cast %112 : vector<4xf32> to vector<4x1xf32>
    %114 = vector.broadcast %85 : vector<1x32xf32> to vector<4x32xf32>
    %115 = arith.mulf %43, %114 : vector<4x32xf32>
    %cst_53 = arith.constant dense<0.000000e+00> : vector<4xf32>
    %116 = vector.multi_reduction <add>, %115, %cst_53 [1] : vector<4x32xf32> to vector<4xf32>
    %117 = vector.shape_cast %116 : vector<4xf32> to vector<4x1xf32>
    %118 = arith.maximumf %89, %93 : vector<4x1xf32>
    %119 = arith.maximumf %118, %97 : vector<4x1xf32>
    %120 = arith.maximumf %119, %101 : vector<4x1xf32>
    %121 = arith.maximumf %120, %105 : vector<4x1xf32>
    %122 = arith.maximumf %121, %109 : vector<4x1xf32>
    %123 = arith.maximumf %122, %113 : vector<4x1xf32>
    %124 = arith.maximumf %123, %117 : vector<4x1xf32>
    %125 = arith.subf %89, %124 : vector<4x1xf32>
    %126 = math.exp %125 : vector<4x1xf32>
    %127 = arith.subf %93, %124 : vector<4x1xf32>
    %128 = math.exp %127 : vector<4x1xf32>
    %129 = arith.subf %97, %124 : vector<4x1xf32>
    %130 = math.exp %129 : vector<4x1xf32>
    %131 = arith.subf %101, %124 : vector<4x1xf32>
    %132 = math.exp %131 : vector<4x1xf32>
    %133 = arith.subf %105, %124 : vector<4x1xf32>
    %134 = math.exp %133 : vector<4x1xf32>
    %135 = arith.subf %109, %124 : vector<4x1xf32>
    %136 = math.exp %135 : vector<4x1xf32>
    %137 = arith.subf %113, %124 : vector<4x1xf32>
    %138 = math.exp %137 : vector<4x1xf32>
    %139 = arith.subf %117, %124 : vector<4x1xf32>
    %140 = math.exp %139 : vector<4x1xf32>
    %141 = arith.addf %126, %128 : vector<4x1xf32>
    %142 = arith.addf %141, %130 : vector<4x1xf32>
    %143 = arith.addf %142, %132 : vector<4x1xf32>
    %144 = arith.addf %143, %134 : vector<4x1xf32>
    %145 = arith.addf %144, %136 : vector<4x1xf32>
    %146 = arith.addf %145, %138 : vector<4x1xf32>
    %147 = arith.addf %146, %140 : vector<4x1xf32>
    %cst_54 = arith.constant 1.000000e+00 : f32
    %148 = vector.broadcast %cst_54 : f32 to vector<4x1xf32>
    %149 = arith.divf %148, %147 : vector<4x1xf32>
    %cst_55 = arith.constant 0.000000e+00 : f32
    %150 = vector.broadcast %cst_55 : f32 to vector<4x32xf32>
    %151 = arith.mulf %126, %149 : vector<4x1xf32>
    %c0_56 = arith.constant 0 : index
    %c0_57 = arith.constant 0 : index
    %152 = vector.load %arg23[%c0_56, %c0_57] : memref<4x8xf32, #tpu.memory_space<vmem>>, vector<4x1xf32>
    tpu.vector_store %arg23[%c0_56, %c0_57], %151 {strides = array<i32>} : memref<4x8xf32, #tpu.memory_space<vmem>>, vector<4x1xf32>,
    %153 = vector.broadcast %151 : vector<4x1xf32> to vector<4x32xf32>
    %154 = arith.mulf %153, %29 : vector<4x32xf32>
    %155 = arith.addf %150, %154 : vector<4x32xf32>
    %156 = arith.mulf %128, %149 : vector<4x1xf32>
    %c0_58 = arith.constant 0 : index
    %c1_59 = arith.constant 1 : index
    %157 = vector.load %arg23[%c0_58, %c1_59] : memref<4x8xf32, #tpu.memory_space<vmem>>, vector<4x1xf32>
    tpu.vector_store %arg23[%c0_58, %c1_59], %156 {strides = array<i32>} : memref<4x8xf32, #tpu.memory_space<vmem>>, vector<4x1xf32>,
    %158 = vector.broadcast %156 : vector<4x1xf32> to vector<4x32xf32>
    %159 = arith.mulf %158, %31 : vector<4x32xf32>
    %160 = arith.addf %155, %159 : vector<4x32xf32>
    %161 = arith.mulf %130, %149 : vector<4x1xf32>
    %c0_60 = arith.constant 0 : index
    %c2_61 = arith.constant 2 : index
    %162 = vector.load %arg23[%c0_60, %c2_61] : memref<4x8xf32, #tpu.memory_space<vmem>>, vector<4x1xf32>
    tpu.vector_store %arg23[%c0_60, %c2_61], %161 {strides = array<i32>} : memref<4x8xf32, #tpu.memory_space<vmem>>, vector<4x1xf32>,
    %163 = vector.broadcast %161 : vector<4x1xf32> to vector<4x32xf32>
    %164 = arith.mulf %163, %33 : vector<4x32xf32>
    %165 = arith.addf %160, %164 : vector<4x32xf32>
    %166 = arith.mulf %132, %149 : vector<4x1xf32>
    %c0_62 = arith.constant 0 : index
    %c3_63 = arith.constant 3 : index
    %167 = vector.load %arg23[%c0_62, %c3_63] : memref<4x8xf32, #tpu.memory_space<vmem>>, vector<4x1xf32>
    tpu.vector_store %arg23[%c0_62, %c3_63], %166 {strides = array<i32>} : memref<4x8xf32, #tpu.memory_space<vmem>>, vector<4x1xf32>,
    %168 = vector.broadcast %166 : vector<4x1xf32> to vector<4x32xf32>
    %169 = arith.mulf %168, %35 : vector<4x32xf32>
    %170 = arith.addf %165, %169 : vector<4x32xf32>
    %171 = arith.mulf %134, %149 : vector<4x1xf32>
    %c0_64 = arith.constant 0 : index
    %c4_65 = arith.constant 4 : index
    %172 = vector.load %arg23[%c0_64, %c4_65] : memref<4x8xf32, #tpu.memory_space<vmem>>, vector<4x1xf32>
    tpu.vector_store %arg23[%c0_64, %c4_65], %171 {strides = array<i32>} : memref<4x8xf32, #tpu.memory_space<vmem>>, vector<4x1xf32>,
    %173 = vector.broadcast %171 : vector<4x1xf32> to vector<4x32xf32>
    %174 = arith.mulf %173, %37 : vector<4x32xf32>
    %175 = arith.addf %170, %174 : vector<4x32xf32>
    %176 = arith.mulf %136, %149 : vector<4x1xf32>
    %c0_66 = arith.constant 0 : index
    %c5_67 = arith.constant 5 : index
    %177 = vector.load %arg23[%c0_66, %c5_67] : memref<4x8xf32, #tpu.memory_space<vmem>>, vector<4x1xf32>
    tpu.vector_store %arg23[%c0_66, %c5_67], %176 {strides = array<i32>} : memref<4x8xf32, #tpu.memory_space<vmem>>, vector<4x1xf32>,
    %178 = vector.broadcast %176 : vector<4x1xf32> to vector<4x32xf32>
    %179 = arith.mulf %178, %39 : vector<4x32xf32>
    %180 = arith.addf %175, %179 : vector<4x32xf32>
    %181 = arith.mulf %138, %149 : vector<4x1xf32>
    %c0_68 = arith.constant 0 : index
    %c6_69 = arith.constant 6 : index
    %182 = vector.load %arg23[%c0_68, %c6_69] : memref<4x8xf32, #tpu.memory_space<vmem>>, vector<4x1xf32>
    tpu.vector_store %arg23[%c0_68, %c6_69], %181 {strides = array<i32>} : memref<4x8xf32, #tpu.memory_space<vmem>>, vector<4x1xf32>,
    %183 = vector.broadcast %181 : vector<4x1xf32> to vector<4x32xf32>
    %184 = arith.mulf %183, %41 : vector<4x32xf32>
    %185 = arith.addf %180, %184 : vector<4x32xf32>
    %186 = arith.mulf %140, %149 : vector<4x1xf32>
    %c0_70 = arith.constant 0 : index
    %c7_71 = arith.constant 7 : index
    %187 = vector.load %arg23[%c0_70, %c7_71] : memref<4x8xf32, #tpu.memory_space<vmem>>, vector<4x1xf32>
    tpu.vector_store %arg23[%c0_70, %c7_71], %186 {strides = array<i32>} : memref<4x8xf32, #tpu.memory_space<vmem>>, vector<4x1xf32>,
    %188 = vector.broadcast %186 : vector<4x1xf32> to vector<4x32xf32>
    %189 = arith.mulf %188, %43 : vector<4x32xf32>
    %190 = arith.addf %185, %189 : vector<4x32xf32>
    %c0_72 = arith.constant 0 : index
    %c0_73 = arith.constant 0 : index
    %191 = vector.load %arg11[%c0_72, %c0_73] : memref<32x96xbf16, #tpu.memory_space<vmem>>, vector<32x96xbf16>
    %cst_74 = arith.constant dense<0.000000e+00> : vector<4x96xf32>
    %192 = tpu.matmul %1, %191, %cst_74 {dimension_numbers = #tpu.dot_dimension_numbers<[1], [0], [0], [1], [0, 0, 1, 1], [], []>} : vector<4x32xbf16>, vector<32x96xbf16>, vector<4x96xf32> -> vector<4x96xf32>
    %193 = arith.truncf %190 : vector<4x32xf32> to vector<4x32xbf16>
    %c0_75 = arith.constant 0 : index
    %c0_76 = arith.constant 0 : index
    %194 = vector.load %arg12[%c0_75, %c0_76] : memref<32x96xbf16, #tpu.memory_space<vmem>>, vector<32x96xbf16>
    %cst_77 = arith.constant dense<0.000000e+00> : vector<4x96xf32>
    %195 = tpu.matmul %193, %194, %cst_77 {dimension_numbers = #tpu.dot_dimension_numbers<[1], [0], [0], [1], [0, 0, 1, 1], [], []>} : vector<4x32xbf16>, vector<32x96xbf16>, vector<4x96xf32> -> vector<4x96xf32>
    %196 = arith.addf %192, %195 : vector<4x96xf32>
    %c0_78 = arith.constant 0 : index
    %c0_79 = arith.constant 0 : index
    %197 = vector.load %arg14[%c0_78, %c0_79] : memref<1x96xf32, #tpu.memory_space<vmem>>, vector<1x96xf32>
    %198 = vector.broadcast %197 : vector<1x96xf32> to vector<4x96xf32>
    %199 = arith.addf %196, %198 : vector<4x96xf32>
    %c0_80 = arith.constant 0 : index
    %c0_81 = arith.constant 0 : index
    %200 = vector.load %arg13[%c0_80, %c0_81] : memref<32x96xbf16, #tpu.memory_space<vmem>>, vector<32x96xbf16>
    %c0_82 = arith.constant 0 : index
    %c0_83 = arith.constant 0 : index
    %201 = vector.load %arg15[%c0_82, %c0_83] : memref<1x96xf32, #tpu.memory_space<vmem>>, vector<1x96xf32>
    %cst_84 = arith.constant 0.000000e+00 : f32
    %202 = vector.broadcast %cst_84 : f32 to vector<4x32xf32>
    %203 = arith.truncf %18 : vector<4x32xf32> to vector<4x32xbf16>
    %cst_85 = arith.constant dense<0.000000e+00> : vector<4x96xf32>
    %204 = tpu.matmul %203, %200, %cst_85 {dimension_numbers = #tpu.dot_dimension_numbers<[1], [0], [0], [1], [0, 0, 1, 1], [], []>} : vector<4x32xbf16>, vector<32x96xbf16>, vector<4x96xf32> -> vector<4x96xf32>
    %205 = vector.broadcast %201 : vector<1x96xf32> to vector<4x96xf32>
    %206 = arith.addf %204, %205 : vector<4x96xf32>
    %207 = vector.extract_strided_slice %199 {offsets = [0, 0], sizes = [4, 32], strides = [1, 1]} : vector<4x96xf32> to vector<4x32xf32>
    %208 = vector.extract_strided_slice %206 {offsets = [0, 0], sizes = [4, 32], strides = [1, 1]} : vector<4x96xf32> to vector<4x32xf32>
    %209 = arith.addf %207, %208 : vector<4x32xf32>
    %210 = arith.negf %209 : vector<4x32xf32>
    %211 = math.exp %210 : vector<4x32xf32>
    %cst_86 = arith.constant 1.000000e+00 : f32
    %212 = vector.broadcast %cst_86 : f32 to vector<4x32xf32>
    %213 = arith.addf %212, %211 : vector<4x32xf32>
    %214 = arith.divf %212, %213 : vector<4x32xf32>
    %215 = vector.extract_strided_slice %199 {offsets = [0, 32], sizes = [4, 32], strides = [1, 1]} : vector<4x96xf32> to vector<4x32xf32>
    %216 = vector.extract_strided_slice %206 {offsets = [0, 32], sizes = [4, 32], strides = [1, 1]} : vector<4x96xf32> to vector<4x32xf32>
    %217 = arith.addf %215, %216 : vector<4x32xf32>
    %218 = arith.negf %217 : vector<4x32xf32>
    %219 = math.exp %218 : vector<4x32xf32>
    %cst_87 = arith.constant 1.000000e+00 : f32
    %220 = vector.broadcast %cst_87 : f32 to vector<4x32xf32>
    %221 = arith.addf %220, %219 : vector<4x32xf32>
    %222 = arith.divf %220, %221 : vector<4x32xf32>
    %223 = vector.extract_strided_slice %199 {offsets = [0, 64], sizes = [4, 32], strides = [1, 1]} : vector<4x96xf32> to vector<4x32xf32>
    %224 = vector.extract_strided_slice %206 {offsets = [0, 64], sizes = [4, 32], strides = [1, 1]} : vector<4x96xf32> to vector<4x32xf32>
    %225 = arith.mulf %214, %224 : vector<4x32xf32>
    %226 = arith.addf %223, %225 : vector<4x32xf32>
    %227 = math.tanh %226 : vector<4x32xf32>
    %cst_88 = arith.constant 1.000000e+00 : f32
    %228 = vector.broadcast %cst_88 : f32 to vector<4x32xf32>
    %229 = arith.subf %228, %222 : vector<4x32xf32>
    %230 = arith.mulf %229, %227 : vector<4x32xf32>
    %231 = arith.mulf %222, %18 : vector<4x32xf32>
    %232 = arith.addf %230, %231 : vector<4x32xf32>
    %233 = vector.extract_strided_slice %2 {offsets = [0, 0], sizes = [4, 1], strides = [1, 1]} : vector<4x2xf32> to vector<4x1xf32>
    %cst_89 = arith.constant 1.000000e+00 : f32
    %234 = vector.broadcast %cst_89 : f32 to vector<4x1xf32>
    %235 = arith.subf %234, %233 : vector<4x1xf32>
    %236 = vector.broadcast %235 : vector<4x1xf32> to vector<4x32xf32>
    %237 = arith.mulf %18, %236 : vector<4x32xf32>
    %238 = vector.broadcast %233 : vector<4x1xf32> to vector<4x32xf32>
    %239 = arith.mulf %232, %238 : vector<4x32xf32>
    %240 = arith.addf %237, %239 : vector<4x32xf32>
    %c0_90 = arith.constant 0 : index
    %c0_91 = arith.constant 0 : index
    %c0_92 = arith.constant 0 : index
    %241 = vector.load %arg21[%c0_90, %c0_91, %c0_92] : memref<2x4x32xf32, #tpu.memory_space<vmem>>, vector<1x4x32xf32>
    %242 = vector.shape_cast %241 : vector<1x4x32xf32> to vector<4x32xf32>
    %243 = vector.shape_cast %240 : vector<4x32xf32> to vector<1x4x32xf32>
    tpu.vector_store %arg21[%c0_90, %c0_91, %c0_92], %243 {strides = array<i32>} : memref<2x4x32xf32, #tpu.memory_space<vmem>>, vector<1x4x32xf32>,
    %244 = vector.extract_strided_slice %16 {offsets = [0, 0], sizes = [4, 1], strides = [1, 1]} : vector<4x2xf32> to vector<4x1xf32>
    %245 = vector.broadcast %244 : vector<4x1xf32> to vector<4x32xf32>
    %246 = arith.mulf %245, %240 : vector<4x32xf32>
    %247 = arith.addf %202, %246 : vector<4x32xf32>
    %248 = arith.truncf %20 : vector<4x32xf32> to vector<4x32xbf16>
    %cst_93 = arith.constant dense<0.000000e+00> : vector<4x96xf32>
    %249 = tpu.matmul %248, %200, %cst_93 {dimension_numbers = #tpu.dot_dimension_numbers<[1], [0], [0], [1], [0, 0, 1, 1], [], []>} : vector<4x32xbf16>, vector<32x96xbf16>, vector<4x96xf32> -> vector<4x96xf32>
    %250 = vector.broadcast %201 : vector<1x96xf32> to vector<4x96xf32>
    %251 = arith.addf %249, %250 : vector<4x96xf32>
    %252 = vector.extract_strided_slice %199 {offsets = [0, 0], sizes = [4, 32], strides = [1, 1]} : vector<4x96xf32> to vector<4x32xf32>
    %253 = vector.extract_strided_slice %251 {offsets = [0, 0], sizes = [4, 32], strides = [1, 1]} : vector<4x96xf32> to vector<4x32xf32>
    %254 = arith.addf %252, %253 : vector<4x32xf32>
    %255 = arith.negf %254 : vector<4x32xf32>
    %256 = math.exp %255 : vector<4x32xf32>
    %cst_94 = arith.constant 1.000000e+00 : f32
    %257 = vector.broadcast %cst_94 : f32 to vector<4x32xf32>
    %258 = arith.addf %257, %256 : vector<4x32xf32>
    %259 = arith.divf %257, %258 : vector<4x32xf32>
    %260 = vector.extract_strided_slice %199 {offsets = [0, 32], sizes = [4, 32], strides = [1, 1]} : vector<4x96xf32> to vector<4x32xf32>
    %261 = vector.extract_strided_slice %251 {offsets = [0, 32], sizes = [4, 32], strides = [1, 1]} : vector<4x96xf32> to vector<4x32xf32>
    %262 = arith.addf %260, %261 : vector<4x32xf32>
    %263 = arith.negf %262 : vector<4x32xf32>
    %264 = math.exp %263 : vector<4x32xf32>
    %cst_95 = arith.constant 1.000000e+00 : f32
    %265 = vector.broadcast %cst_95 : f32 to vector<4x32xf32>
    %266 = arith.addf %265, %264 : vector<4x32xf32>
    %267 = arith.divf %265, %266 : vector<4x32xf32>
    %268 = vector.extract_strided_slice %199 {offsets = [0, 64], sizes = [4, 32], strides = [1, 1]} : vector<4x96xf32> to vector<4x32xf32>
    %269 = vector.extract_strided_slice %251 {offsets = [0, 64], sizes = [4, 32], strides = [1, 1]} : vector<4x96xf32> to vector<4x32xf32>
    %270 = arith.mulf %259, %269 : vector<4x32xf32>
    %271 = arith.addf %268, %270 : vector<4x32xf32>
    %272 = math.tanh %271 : vector<4x32xf32>
    %cst_96 = arith.constant 1.000000e+00 : f32
    %273 = vector.broadcast %cst_96 : f32 to vector<4x32xf32>
    %274 = arith.subf %273, %267 : vector<4x32xf32>
    %275 = arith.mulf %274, %272 : vector<4x32xf32>
    %276 = arith.mulf %267, %20 : vector<4x32xf32>
    %277 = arith.addf %275, %276 : vector<4x32xf32>
    %278 = vector.extract_strided_slice %2 {offsets = [0, 1], sizes = [4, 1], strides = [1, 1]} : vector<4x2xf32> to vector<4x1xf32>
    %cst_97 = arith.constant 1.000000e+00 : f32
    %279 = vector.broadcast %cst_97 : f32 to vector<4x1xf32>
    %280 = arith.subf %279, %278 : vector<4x1xf32>
    %281 = vector.broadcast %280 : vector<4x1xf32> to vector<4x32xf32>
    %282 = arith.mulf %20, %281 : vector<4x32xf32>
    %283 = vector.broadcast %278 : vector<4x1xf32> to vector<4x32xf32>
    %284 = arith.mulf %277, %283 : vector<4x32xf32>
    %285 = arith.addf %282, %284 : vector<4x32xf32>
    %c1_98 = arith.constant 1 : index
    %c0_99 = arith.constant 0 : index
    %c0_100 = arith.constant 0 : index
    %286 = vector.load %arg21[%c1_98, %c0_99, %c0_100] : memref<2x4x32xf32, #tpu.memory_space<vmem>>, vector<1x4x32xf32>
    %287 = vector.shape_cast %286 : vector<1x4x32xf32> to vector<4x32xf32>
    %288 = vector.shape_cast %285 : vector<4x32xf32> to vector<1x4x32xf32>
    tpu.vector_store %arg21[%c1_98, %c0_99, %c0_100], %288 {strides = array<i32>} : memref<2x4x32xf32, #tpu.memory_space<vmem>>, vector<1x4x32xf32>,
    %289 = vector.extract_strided_slice %16 {offsets = [0, 1], sizes = [4, 1], strides = [1, 1]} : vector<4x2xf32> to vector<4x1xf32>
    %290 = vector.broadcast %289 : vector<4x1xf32> to vector<4x32xf32>
    %291 = arith.mulf %290, %285 : vector<4x32xf32>
    %292 = arith.addf %247, %291 : vector<4x32xf32>
    %293 = arith.truncf %292 : vector<4x32xf32> to vector<4x32xbf16>
    %c0_101 = arith.constant 0 : index
    %c0_102 = arith.constant 0 : index
    %294 = vector.load %arg16[%c0_101, %c0_102] : memref<32x96xbf16, #tpu.memory_space<vmem>>, vector<32x96xbf16>
    %cst_103 = arith.constant dense<0.000000e+00> : vector<4x96xf32>
    %295 = tpu.matmul %293, %294, %cst_103 {dimension_numbers = #tpu.dot_dimension_numbers<[1], [0], [0], [1], [0, 0, 1, 1], [], []>} : vector<4x32xbf16>, vector<32x96xbf16>, vector<4x96xf32> -> vector<4x96xf32>
    %c0_104 = arith.constant 0 : index
    %c0_105 = arith.constant 0 : index
    %296 = vector.load %arg18[%c0_104, %c0_105] : memref<1x96xf32, #tpu.memory_space<vmem>>, vector<1x96xf32>
    %297 = vector.broadcast %296 : vector<1x96xf32> to vector<4x96xf32>
    %298 = arith.addf %295, %297 : vector<4x96xf32>
    %c0_106 = arith.constant 0 : index
    %c0_107 = arith.constant 0 : index
    %299 = vector.load %arg4[%c0_106, %c0_107] : memref<4x32xf32, #tpu.memory_space<vmem>>, vector<4x32xf32>
    %c0_108 = arith.constant 0 : index
    %c0_109 = arith.constant 0 : index
    %300 = vector.load %arg17[%c0_108, %c0_109] : memref<32x96xbf16, #tpu.memory_space<vmem>>, vector<32x96xbf16>
    %c0_110 = arith.constant 0 : index
    %c0_111 = arith.constant 0 : index
    %301 = vector.load %arg19[%c0_110, %c0_111] : memref<1x96xf32, #tpu.memory_space<vmem>>, vector<1x96xf32>
    %302 = arith.truncf %299 : vector<4x32xf32> to vector<4x32xbf16>
    %cst_112 = arith.constant dense<0.000000e+00> : vector<4x96xf32>
    %303 = tpu.matmul %302, %300, %cst_112 {dimension_numbers = #tpu.dot_dimension_numbers<[1], [0], [0], [1], [0, 0, 1, 1], [], []>} : vector<4x32xbf16>, vector<32x96xbf16>, vector<4x96xf32> -> vector<4x96xf32>
    %304 = vector.broadcast %301 : vector<1x96xf32> to vector<4x96xf32>
    %305 = arith.addf %303, %304 : vector<4x96xf32>
    %306 = vector.extract_strided_slice %298 {offsets = [0, 0], sizes = [4, 32], strides = [1, 1]} : vector<4x96xf32> to vector<4x32xf32>
    %307 = vector.extract_strided_slice %305 {offsets = [0, 0], sizes = [4, 32], strides = [1, 1]} : vector<4x96xf32> to vector<4x32xf32>
    %308 = arith.addf %306, %307 : vector<4x32xf32>
    %309 = arith.negf %308 : vector<4x32xf32>
    %310 = math.exp %309 : vector<4x32xf32>
    %cst_113 = arith.constant 1.000000e+00 : f32
    %311 = vector.broadcast %cst_113 : f32 to vector<4x32xf32>
    %312 = arith.addf %311, %310 : vector<4x32xf32>
    %313 = arith.divf %311, %312 : vector<4x32xf32>
    %314 = vector.extract_strided_slice %298 {offsets = [0, 32], sizes = [4, 32], strides = [1, 1]} : vector<4x96xf32> to vector<4x32xf32>
    %315 = vector.extract_strided_slice %305 {offsets = [0, 32], sizes = [4, 32], strides = [1, 1]} : vector<4x96xf32> to vector<4x32xf32>
    %316 = arith.addf %314, %315 : vector<4x32xf32>
    %317 = arith.negf %316 : vector<4x32xf32>
    %318 = math.exp %317 : vector<4x32xf32>
    %cst_114 = arith.constant 1.000000e+00 : f32
    %319 = vector.broadcast %cst_114 : f32 to vector<4x32xf32>
    %320 = arith.addf %319, %318 : vector<4x32xf32>
    %321 = arith.divf %319, %320 : vector<4x32xf32>
    %322 = vector.extract_strided_slice %298 {offsets = [0, 64], sizes = [4, 32], strides = [1, 1]} : vector<4x96xf32> to vector<4x32xf32>
    %323 = vector.extract_strided_slice %305 {offsets = [0, 64], sizes = [4, 32], strides = [1, 1]} : vector<4x96xf32> to vector<4x32xf32>
    %324 = arith.mulf %313, %323 : vector<4x32xf32>
    %325 = arith.addf %322, %324 : vector<4x32xf32>
    %326 = math.tanh %325 : vector<4x32xf32>
    %cst_115 = arith.constant 1.000000e+00 : f32
    %327 = vector.broadcast %cst_115 : f32 to vector<4x32xf32>
    %328 = arith.subf %327, %321 : vector<4x32xf32>
    %329 = arith.mulf %328, %326 : vector<4x32xf32>
    %330 = arith.mulf %321, %299 : vector<4x32xf32>
    %331 = arith.addf %329, %330 : vector<4x32xf32>
    %c0_116 = arith.constant 0 : index
    %c0_117 = arith.constant 0 : index
    %332 = vector.load %arg20[%c0_116, %c0_117] : memref<4x32xf32, #tpu.memory_space<vmem>>, vector<4x32xf32>
    tpu.vector_store %arg20[%c0_116, %c0_117], %84 {strides = array<i32>} : memref<4x32xf32, #tpu.memory_space<vmem>>, vector<4x32xf32>,
    %c0_118 = arith.constant 0 : index
    %c0_119 = arith.constant 0 : index
    %333 = vector.load %arg22[%c0_118, %c0_119] : memref<4x32xf32, #tpu.memory_space<vmem>>, vector<4x32xf32>
    tpu.vector_store %arg22[%c0_118, %c0_119], %331 {strides = array<i32>} : memref<4x32xf32, #tpu.memory_space<vmem>>, vector<4x32xf32>,
    return
  }
}

</mosaic_0001>

<llo_original>
// kernel: tpu_custom_call.1
$region0: #{tpu_custom_call.1}
  #allocation0 [shape = 'u32[]', space=smem, size = 0x4, offset = 0x4, fixed_abs, tag = 'smem constant byte address 0x4 - core index']
  #allocation1 [shape = 'u32[72,128]{1,0:T(1,128)}', space=vmem, size = 0x9000, scoped, tag = 'internal scratch']
  %s0 = inlined_call_operand.hbm [shape: f32[4,32], index: 0, kind: input, shape index: {}]
  %s1 = inlined_call_operand.vmem [shape: f32[4,2], index: 1, kind: input, shape index: {}]
  %s2 = inlined_call_operand.hbm [shape: f32[8,4,32], index: 2, kind: input, shape index: {}]
  %s3 = inlined_call_operand.hbm [shape: f32[2,4,32], index: 3, kind: input, shape index: {}]
  %s4 = inlined_call_operand.hbm [shape: f32[4,32], index: 4, kind: input, shape index: {}]
  %s5 = inlined_call_operand.hbm [shape: bf16[32,96], index: 5, kind: input, shape index: {}]
  %s6 = inlined_call_operand.hbm [shape: bf16[32,96], index: 6, kind: input, shape index: {}]
  %s7 = inlined_call_operand.hbm [shape: bf16[32,96], index: 7, kind: input, shape index: {}]
  %s8 = inlined_call_operand.hbm [shape: f32[1,96], index: 8, kind: input, shape index: {}]
  %s9 = inlined_call_operand.hbm [shape: f32[1,96], index: 9, kind: input, shape index: {}]
  %s10 = inlined_call_operand.hbm [shape: f32[1,32], index: 10, kind: input, shape index: {}]
  %s11 = inlined_call_operand.vmem [shape: bf16[32,96], index: 11, kind: input, shape index: {}]
  %s12 = inlined_call_operand.hbm [shape: bf16[32,96], index: 12, kind: input, shape index: {}]
  %s13 = inlined_call_operand.hbm [shape: bf16[32,96], index: 13, kind: input, shape index: {}]
  %s14 = inlined_call_operand.vmem [shape: f32[1,96], index: 14, kind: input, shape index: {}]
  %s15 = inlined_call_operand.vmem [shape: f32[1,96], index: 15, kind: input, shape index: {}]
  %s16 = inlined_call_operand.hbm [shape: bf16[32,96], index: 16, kind: input, shape index: {}]
  %s17 = inlined_call_operand.hbm [shape: bf16[32,96], index: 17, kind: input, shape index: {}]
  %s18 = inlined_call_operand.vmem [shape: f32[1,96], index: 18, kind: input, shape index: {}]
  %s19 = inlined_call_operand.vmem [shape: f32[1,96], index: 19, kind: input, shape index: {}]
  %s20 = inlined_call_operand.hbm [shape: f32[4,32], index: 20, kind: output, shape index: {0}]
  %s21 = inlined_call_operand.hbm [shape: f32[2,4,32], index: 21, kind: output, shape index: {1}]
  %s22 = inlined_call_operand.hbm [shape: f32[4,32], index: 22, kind: output, shape index: {2}]
  %s23 = inlined_call_operand.hbm [shape: f32[4,8], index: 23, kind: output, shape index: {3}]
  %24 = xla_tuple %s20, %s21, %s22, %s23
  %s25 = sld [smem:[#allocation0]]
  $region170: #{tpu_custom_call.1} parent=0
    _
  %s27 = ssub.s32 1, %s25
  %s28 = scalar_select 0, %s27, %s25
  $region1: #{tpu_custom_call.1} parent=0
    #allocation2 [shape = 'u8[2048]{0}', space=vmem, size = 0x800, scoped, tag = 'input window, operand 0, single buffered']
    #allocation3 [shape = 's32[1]{0}', space=sflag, size = 0x4, scoped, tag = 'scoped memory for tpu_custom_call.1']
    #allocation4 [shape = 's32[1]{0}', space=sflag, size = 0x4, scoped, tag = 'scoped memory for tpu_custom_call.1']
    #allocation5 [shape = 'u8[16384]{0}', space=vmem, size = 0x4000, scoped, tag = 'input window, operand 2, single buffered']
    #allocation6 [shape = 's32[1]{0}', space=sflag, size = 0x4, scoped, tag = 'scoped memory for tpu_custom_call.1']
    #allocation7 [shape = 'u8[4096]{0}', space=vmem, size = 0x1000, scoped, tag = 'input window, operand 3, single buffered']
    #allocation8 [shape = 'u8[2048]{0}', space=vmem, size = 0x800, scoped, tag = 'input window, operand 4, single buffered']
    #allocation9 [shape = 's32[1]{0}', space=sflag, size = 0x4, scoped, tag = 'scoped memory for tpu_custom_call.1']
    #allocation10 [shape = 'u8[8192]{0}', space=vmem, size = 0x2000, scoped, tag = 'input window, operand 5, single buffered']
    #allocation11 [shape = 'u8[8192]{0}', space=vmem, size = 0x2000, scoped, tag = 'input window, operand 6, single buffered']
    #allocation12 [shape = 's32[1]{0}', space=sflag, size = 0x4, scoped, tag = 'scoped memory for tpu_custom_call.1']
    #allocation13 [shape = 'u8[8192]{0}', space=vmem, size = 0x2000, scoped, tag = 'input window, operand 7, single buffered']
    #allocation14 [shape = 'u8[512]{0}', space=vmem, size = 0x400, scoped, tag = 'input window, operand 8, single buffered']
    #allocation15 [shape = 's32[1]{0}', space=sflag, size = 0x4, scoped, tag = 'scoped memory for tpu_custom_call.1']
    #allocation16 [shape = 'u8[512]{0}', space=vmem, size = 0x400, scoped, tag = 'input window, operand 9, single buffered']
    #allocation17 [shape = 'u8[512]{0}', space=vmem, size = 0x400, scoped, tag = 'input window, operand 10, single buffered']
    #allocation18 [shape = 's32[1]{0}', space=sflag, size = 0x4, scoped, tag = 'scoped memory for tpu_custom_call.1']
    #allocation19 [shape = 'u8[8192]{0}', space=vmem, size = 0x2000, scoped, tag = 'input window, operand 12, single buffered']
    #allocation20 [shape = 'u8[8192]{0}', space=vmem, size = 0x2000, scoped, tag = 'input window, operand 13, single buffered']
    #allocation21 [shape = 's32[1]{0}', space=sflag, size = 0x4, scoped, tag = 'scoped memory for tpu_custom_call.1']
    #allocation22 [shape = 'u8[8192]{0}', space=vmem, size = 0x2000, scoped, tag = 'input window, operand 16, single buffered']
    #allocation23 [shape = 'u8[8192]{0}', space=vmem, size = 0x2000, scoped, tag = 'input window, operand 17, single buffered']
    #allocation24 [shape = 's32[1]{0}', space=sflag, size = 0x4, scoped, tag = 'scoped memory for tpu_custom_call.1']
    #allocation25 [shape = 'u8[2048]{0}', space=vmem, size = 0x800, scoped, tag = 'output window, operand 0, single buffered']
    #allocation26 [shape = 'u8[4096]{0}', space=vmem, size = 0x1000, scoped, tag = 'output window, operand 1, single buffered']
    #allocation27 [shape = 's32[1]{0}', space=sflag, size = 0x4, scoped, tag = 'scoped memory for tpu_custom_call.1']
    #allocation28 [shape = 'u8[2048]{0}', space=vmem, size = 0x800, scoped, tag = 'output window, operand 2, single buffered']
    #allocation29 [shape = 'u8[2048]{0}', space=vmem, size = 0x800, scoped, tag = 'output window, operand 3, single buffered']
    #allocation30 [shape = 's32[1]{0}', space=sflag, size = 0x4, scoped, tag = 'scoped memory for tpu_custom_call.1']
    %29 = vsyncpa [#allocation3], 0
    %30 = vsyncpa [#allocation6], 0
    %31 = vsyncpa [#allocation9], 0
    %32 = vsyncpa [#allocation12], 0
    %33 = vsyncpa [#allocation15], 0
    %34 = vsyncpa [#allocation18], 0
    %35 = vsyncpa [#allocation21], 0
    %36 = vsyncpa [#allocation24], 0
    %37 = vsyncpa [#allocation4], 0
    %38 = vsyncpa [#allocation27], 0
    %39 = vsyncpa [#allocation30], 0
    // Predicated region
    $region2: #{tpu_custom_call.1} parent=1 // pred_check
      _
    $region3: #{tpu_custom_call.1} parent=1 // pred_check_branch
      %41 = sbr.rel (0) target = $region5
    $region4: #{tpu_custom_call.1} parent=1 // pred_region
      %43 = vsyncadd [#allocation3], 0
      %s45 = sshll.u32 %s0, 4
      %s46 = int_to_ptr.hbm [resolvable:$true] %s45
      %s47 = sshll.u32 [#allocation2], 4
      %s48 = int_to_ptr.vmem [resolvable:$true] %s47
      %50 = dma.hbm_to_vmem [thread:$0]  %s46, 64, %s48, [#allocation3]
    $region5: #{tpu_custom_call.1} parent=1 // pred_fallthru
      _
    // Predicated region
    $region6: #{tpu_custom_call.1} parent=1 // pred_check
      _
    $region7: #{tpu_custom_call.1} parent=1 // pred_check_branch
      %52 = sbr.rel (0) target = $region9
    $region8: #{tpu_custom_call.1} parent=1 // pred_region
      _
    $region9: #{tpu_custom_call.1} parent=1 // pred_fallthru
      _
    // Predicated region
    $region10: #{tpu_custom_call.1} parent=1 // pred_check
      _
    $region11: #{tpu_custom_call.1} parent=1 // pred_check_branch
      %54 = sbr.rel (0) target = $region13
    $region12: #{tpu_custom_call.1} parent=1 // pred_region
      %56 = vsyncadd [#allocation6], 0
      %s57 = sshll.u32 %s2, 4
      %s58 = int_to_ptr.hbm [resolvable:$true] %s57
      %s59 = sshll.u32 [#allocation5], 4
      %s60 = int_to_ptr.vmem [resolvable:$true] %s59
      %65 = dma.hbm_to_vmem [thread:$0]  %s58, 512, %s60, [#allocation6], 64, 64, 4
    $region13: #{tpu_custom_call.1} parent=1 // pred_fallthru
      _
    // Predicated region
    $region14: #{tpu_custom_call.1} parent=1 // pred_check
      _
    $region15: #{tpu_custom_call.1} parent=1 // pred_check_branch
      %67 = sbr.rel (0) target = $region17
    $region16: #{tpu_custom_call.1} parent=1 // pred_region
      %69 = vsyncadd [#allocation6], 0
      %s70 = sshll.u32 %s3, 4
      %s71 = int_to_ptr.hbm [resolvable:$true] %s70
      %s72 = sshll.u32 [#allocation7], 4
      %s73 = int_to_ptr.vmem [resolvable:$true] %s72
      %78 = dma.hbm_to_vmem [thread:$0]  %s71, 128, %s73, [#allocation6], 64, 64, 4
    $region17: #{tpu_custom_call.1} parent=1 // pred_fallthru
      _
    // Predicated region
    $region18: #{tpu_custom_call.1} parent=1 // pred_check
      _
    $region19: #{tpu_custom_call.1} parent=1 // pred_check_branch
      %80 = sbr.rel (0) target = $region21
    $region20: #{tpu_custom_call.1} parent=1 // pred_region
      %82 = vsyncadd [#allocation9], 0
      %s84 = sshll.u32 %s4, 4
      %s85 = int_to_ptr.hbm [resolvable:$true] %s84
      %s86 = sshll.u32 [#allocation8], 4
      %s87 = int_to_ptr.vmem [resolvable:$true] %s86
      %89 = dma.hbm_to_vmem [thread:$0]  %s85, 64, %s87, [#allocation9]
    $region21: #{tpu_custom_call.1} parent=1 // pred_fallthru
      _
    // Predicated region
    $region22: #{tpu_custom_call.1} parent=1 // pred_check
      _
    $region23: #{tpu_custom_call.1} parent=1 // pred_check_branch
      %91 = sbr.rel (0) target = $region25
    $region24: #{tpu_custom_call.1} parent=1 // pred_region
      %93 = vsyncadd [#allocation9], 0
      %s94 = sshll.u32 %s5, 4
      %s95 = int_to_ptr.hbm [resolvable:$true] %s94
      %s96 = sshll.u32 [#allocation10], 4
      %s97 = int_to_ptr.vmem [resolvable:$true] %s96
      %102 = dma.hbm_to_vmem [thread:$0]  %s95, 256, %s97, [#allocation9], 64, 64, 4
    $region25: #{tpu_custom_call.1} parent=1 // pred_fallthru
      _
    // Predicated region
    $region26: #{tpu_custom_call.1} parent=1 // pred_check
      _
    $region27: #{tpu_custom_call.1} parent=1 // pred_check_branch
      %104 = sbr.rel (0) target = $region29
    $region28: #{tpu_custom_call.1} parent=1 // pred_region
      %106 = vsyncadd [#allocation12], 0
      %s107 = sshll.u32 %s6, 4
      %s108 = int_to_ptr.hbm [resolvable:$true] %s107
      %s109 = sshll.u32 [#allocation11], 4
      %s110 = int_to_ptr.vmem [resolvable:$true] %s109
      %115 = dma.hbm_to_vmem [thread:$0]  %s108, 256, %s110, [#allocation12], 64, 64, 4
    $region29: #{tpu_custom_call.1} parent=1 // pred_fallthru
      _
    // Predicated region
    $region30: #{tpu_custom_call.1} parent=1 // pred_check
      _
    $region31: #{tpu_custom_call.1} parent=1 // pred_check_branch
      %117 = sbr.rel (0) target = $region33
    $region32: #{tpu_custom_call.1} parent=1 // pred_region
      %119 = vsyncadd [#allocation12], 0
      %s120 = sshll.u32 %s7, 4
      %s121 = int_to_ptr.hbm [resolvable:$true] %s120
      %s122 = sshll.u32 [#allocation13], 4
      %s123 = int_to_ptr.vmem [resolvable:$true] %s122
      %128 = dma.hbm_to_vmem [thread:$0]  %s121, 256, %s123, [#allocation12], 64, 64, 4
    $region33: #{tpu_custom_call.1} parent=1 // pred_fallthru
      _
    // Predicated region
    $region34: #{tpu_custom_call.1} parent=1 // pred_check
      _
    $region35: #{tpu_custom_call.1} parent=1 // pred_check_branch
      %130 = sbr.rel (0) target = $region37
    $region36: #{tpu_custom_call.1} parent=1 // pred_region
      %132 = vsyncadd [#allocation15], 0
      %s134 = sshll.u32 %s8, 4
      %s135 = int_to_ptr.hbm [resolvable:$true] %s134
      %s136 = sshll.u32 [#allocation14], 4
      %s137 = int_to_ptr.vmem [resolvable:$true] %s136
      %139 = dma.hbm_to_vmem [thread:$0]  %s135, 16, %s137, [#allocation15]
    $region37: #{tpu_custom_call.1} parent=1 // pred_fallthru
      _
    // Predicated region
    $region38: #{tpu_custom_call.1} parent=1 // pred_check
      _
    $region39: #{tpu_custom_call.1} parent=1 // pred_check_branch
      %141 = sbr.rel (0) target = $region41
    $region40: #{tpu_custom_call.1} parent=1 // pred_region
      %143 = vsyncadd [#allocation15], 0
      %s145 = sshll.u32 %s9, 4
      %s146 = int_to_ptr.hbm [resolvable:$true] %s145
      %s147 = sshll.u32 [#allocation16], 4
      %s148 = int_to_ptr.vmem [resolvable:$true] %s147
      %150 = dma.hbm_to_vmem [thread:$0]  %s146, 16, %s148, [#allocation15]
    $region41: #{tpu_custom_call.1} parent=1 // pred_fallthru
      _
    // Predicated region
    $region42: #{tpu_custom_call.1} parent=1 // pred_check
      _
    $region43: #{tpu_custom_call.1} parent=1 // pred_check_branch
      %152 = sbr.rel (0) target = $region45
    $region44: #{tpu_custom_call.1} parent=1 // pred_region
      %154 = vsyncadd [#allocation18], 0
      %s156 = sshll.u32 %s10, 4
      %s157 = int_to_ptr.hbm [resolvable:$true] %s156
      %s158 = sshll.u32 [#allocation17], 4
      %s159 = int_to_ptr.vmem [resolvable:$true] %s158
      %161 = dma.hbm_to_vmem [thread:$0]  %s157, 16, %s159, [#allocation18]
    $region45: #{tpu_custom_call.1} parent=1 // pred_fallthru
      _
    // Predicated region
    $region46: #{tpu_custom_call.1} parent=1 // pred_check
      _
    $region47: #{tpu_custom_call.1} parent=1 // pred_check_branch
      %163 = sbr.rel (0) target = $region49
    $region48: #{tpu_custom_call.1} parent=1 // pred_region
      _
    $region49: #{tpu_custom_call.1} parent=1 // pred_fallthru
      _
    // Predicated region
    $region50: #{tpu_custom_call.1} parent=1 // pred_check
      _
    $region51: #{tpu_custom_call.1} parent=1 // pred_check_branch
      %165 = sbr.rel (0) target = $region53
    $region52: #{tpu_custom_call.1} parent=1 // pred_region
      %167 = vsyncadd [#allocation18], 0
      %s168 = sshll.u32 %s12, 4
      %s169 = int_to_ptr.hbm [resolvable:$true] %s168
      %s170 = sshll.u32 [#allocation19], 4
      %s171 = int_to_ptr.vmem [resolvable:$true] %s170
      %176 = dma.hbm_to_vmem [thread:$0]  %s169, 256, %s171, [#allocation18], 64, 64, 4
    $region53: #{tpu_custom_call.1} parent=1 // pred_fallthru
      _
    // Predicated region
    $region54: #{tpu_custom_call.1} parent=1 // pred_check
      _
    $region55: #{tpu_custom_call.1} parent=1 // pred_check_branch
      %178 = sbr.rel (0) target = $region57
    $region56: #{tpu_custom_call.1} parent=1 // pred_region
      %180 = vsyncadd [#allocation21], 0
      %s181 = sshll.u32 %s13, 4
      %s182 = int_to_ptr.hbm [resolvable:$true] %s181
      %s183 = sshll.u32 [#allocation20], 4
      %s184 = int_to_ptr.vmem [resolvable:$true] %s183
      %189 = dma.hbm_to_vmem [thread:$0]  %s182, 256, %s184, [#allocation21], 64, 64, 4
    $region57: #{tpu_custom_call.1} parent=1 // pred_fallthru
      _
    // Predicated region
    $region58: #{tpu_custom_call.1} parent=1 // pred_check
      _
    $region59: #{tpu_custom_call.1} parent=1 // pred_check_branch
      %191 = sbr.rel (0) target = $region61
    $region60: #{tpu_custom_call.1} parent=1 // pred_region
      _
    $region61: #{tpu_custom_call.1} parent=1 // pred_fallthru
      _
    // Predicated region
    $region62: #{tpu_custom_call.1} parent=1 // pred_check
      _
    $region63: #{tpu_custom_call.1} parent=1 // pred_check_branch
      %193 = sbr.rel (0) target = $region65
    $region64: #{tpu_custom_call.1} parent=1 // pred_region
      _
    $region65: #{tpu_custom_call.1} parent=1 // pred_fallthru
      _
    // Predicated region
    $region66: #{tpu_custom_call.1} parent=1 // pred_check
      _
    $region67: #{tpu_custom_call.1} parent=1 // pred_check_branch
      %195 = sbr.rel (0) target = $region69
    $region68: #{tpu_custom_call.1} parent=1 // pred_region
      %197 = vsyncadd [#allocation21], 0
      %s198 = sshll.u32 %s16, 4
      %s199 = int_to_ptr.hbm [resolvable:$true] %s198
      %s200 = sshll.u32 [#allocation22], 4
      %s201 = int_to_ptr.vmem [resolvable:$true] %s200
      %206 = dma.hbm_to_vmem [thread:$0]  %s199, 256, %s201, [#allocation21], 64, 64, 4
    $region69: #{tpu_custom_call.1} parent=1 // pred_fallthru
      _
    // Predicated region
    $region70: #{tpu_custom_call.1} parent=1 // pred_check
      _
    $region71: #{tpu_custom_call.1} parent=1 // pred_check_branch
      %208 = sbr.rel (0) target = $region73
    $region72: #{tpu_custom_call.1} parent=1 // pred_region
      %210 = vsyncadd [#allocation24], 0
      %s211 = sshll.u32 %s17, 4
      %s212 = int_to_ptr.hbm [resolvable:$true] %s211
      %s213 = sshll.u32 [#allocation23], 4
      %s214 = int_to_ptr.vmem [resolvable:$true] %s213
      %219 = dma.hbm_to_vmem [thread:$0]  %s212, 256, %s214, [#allocation24], 64, 64, 4
    $region73: #{tpu_custom_call.1} parent=1 // pred_fallthru
      _
    // Predicated region
    $region74: #{tpu_custom_call.1} parent=1 // pred_check
      _
    $region75: #{tpu_custom_call.1} parent=1 // pred_check_branch
      %221 = sbr.rel (0) target = $region77
    $region76: #{tpu_custom_call.1} parent=1 // pred_region
      _
    $region77: #{tpu_custom_call.1} parent=1 // pred_fallthru
      _
    // Predicated region
    $region78: #{tpu_custom_call.1} parent=1 // pred_check
      _
    $region79: #{tpu_custom_call.1} parent=1 // pred_check_branch
      %223 = sbr.rel (0) target = $region81
    $region80: #{tpu_custom_call.1} parent=1 // pred_region
      _
    $region81: #{tpu_custom_call.1} parent=1 // pred_fallthru
      _
    // Predicated region
    $region82: #{tpu_custom_call.1} parent=1 // pred_check
      _
    $region83: #{tpu_custom_call.1} parent=1 // pred_check_branch
      %225 = sbr.rel (0) target = $region85
    $region84: #{tpu_custom_call.1} parent=1 // pred_region
      %227 = dma.done [#allocation3], 64
    $region85: #{tpu_custom_call.1} parent=1 // pred_fallthru
      _
    // Predicated region
    $region86: #{tpu_custom_call.1} parent=1 // pred_check
      _
    $region87: #{tpu_custom_call.1} parent=1 // pred_check_branch
      %229 = sbr.rel (0) target = $region89
    $region88: #{tpu_custom_call.1} parent=1 // pred_region
      %231 = dma.done [#allocation6], 512
    $region89: #{tpu_custom_call.1} parent=1 // pred_fallthru
      _
    // Predicated region
    $region90: #{tpu_custom_call.1} parent=1 // pred_check
      _
    $region91: #{tpu_custom_call.1} parent=1 // pred_check_branch
      %233 = sbr.rel (0) target = $region93
    $region92: #{tpu_custom_call.1} parent=1 // pred_region
      %235 = dma.done [#allocation6], 128
    $region93: #{tpu_custom_call.1} parent=1 // pred_fallthru
      _
    // Predicated region
    $region94: #{tpu_custom_call.1} parent=1 // pred_check
      _
    $region95: #{tpu_custom_call.1} parent=1 // pred_check_branch
      %237 = sbr.rel (0) target = $region97
    $region96: #{tpu_custom_call.1} parent=1 // pred_region
      %239 = dma.done [#allocation9], 64
    $region97: #{tpu_custom_call.1} parent=1 // pred_fallthru
      _
    // Predicated region
    $region98: #{tpu_custom_call.1} parent=1 // pred_check
      _
    $region99: #{tpu_custom_call.1} parent=1 // pred_check_branch
      %241 = sbr.rel (0) target = $region101
    $region100: #{tpu_custom_call.1} parent=1 // pred_region
      %243 = dma.done [#allocation9], 256
    $region101: #{tpu_custom_call.1} parent=1 // pred_fallthru
      _
    // Predicated region
    $region102: #{tpu_custom_call.1} parent=1 // pred_check
      _
    $region103: #{tpu_custom_call.1} parent=1 // pred_check_branch
      %245 = sbr.rel (0) target = $region105
    $region104: #{tpu_custom_call.1} parent=1 // pred_region
      %247 = dma.done [#allocation12], 256
    $region105: #{tpu_custom_call.1} parent=1 // pred_fallthru
      _
    // Predicated region
    $region106: #{tpu_custom_call.1} parent=1 // pred_check
      _
    $region107: #{tpu_custom_call.1} parent=1 // pred_check_branch
      %249 = sbr.rel (0) target = $region109
    $region108: #{tpu_custom_call.1} parent=1 // pred_region
      %251 = dma.done [#allocation12], 256
    $region109: #{tpu_custom_call.1} parent=1 // pred_fallthru
      _
    // Predicated region
    $region110: #{tpu_custom_call.1} parent=1 // pred_check
      _
    $region111: #{tpu_custom_call.1} parent=1 // pred_check_branch
      %253 = sbr.rel (0) target = $region113
    $region112: #{tpu_custom_call.1} parent=1 // pred_region
      %255 = dma.done [#allocation15], 16
    $region113: #{tpu_custom_call.1} parent=1 // pred_fallthru
      _
    // Predicated region
    $region114: #{tpu_custom_call.1} parent=1 // pred_check
      _
    $region115: #{tpu_custom_call.1} parent=1 // pred_check_branch
      %257 = sbr.rel (0) target = $region117
    $region116: #{tpu_custom_call.1} parent=1 // pred_region
      %259 = dma.done [#allocation15], 16
    $region117: #{tpu_custom_call.1} parent=1 // pred_fallthru
      _
    // Predicated region
    $region118: #{tpu_custom_call.1} parent=1 // pred_check
      _
    $region119: #{tpu_custom_call.1} parent=1 // pred_check_branch
      %261 = sbr.rel (0) target = $region121
    $region120: #{tpu_custom_call.1} parent=1 // pred_region
      %263 = dma.done [#allocation18], 16
    $region121: #{tpu_custom_call.1} parent=1 // pred_fallthru
      _
    // Predicated region
    $region122: #{tpu_custom_call.1} parent=1 // pred_check
      _
    $region123: #{tpu_custom_call.1} parent=1 // pred_check_branch
      %265 = sbr.rel (0) target = $region125
    $region124: #{tpu_custom_call.1} parent=1 // pred_region
      %267 = dma.done [#allocation18], 256
    $region125: #{tpu_custom_call.1} parent=1 // pred_fallthru
      _
    // Predicated region
    $region126: #{tpu_custom_call.1} parent=1 // pred_check
      _
    $region127: #{tpu_custom_call.1} parent=1 // pred_check_branch
      %269 = sbr.rel (0) target = $region129
    $region128: #{tpu_custom_call.1} parent=1 // pred_region
      %271 = dma.done [#allocation21], 256
    $region129: #{tpu_custom_call.1} parent=1 // pred_fallthru
      _
    // Predicated region
    $region130: #{tpu_custom_call.1} parent=1 // pred_check
      _
    $region131: #{tpu_custom_call.1} parent=1 // pred_check_branch
      %273 = sbr.rel (0) target = $region133
    $region132: #{tpu_custom_call.1} parent=1 // pred_region
      %275 = dma.done [#allocation21], 256
    $region133: #{tpu_custom_call.1} parent=1 // pred_fallthru
      _
    // Predicated region
    $region134: #{tpu_custom_call.1} parent=1 // pred_check
      _
    $region135: #{tpu_custom_call.1} parent=1 // pred_check_branch
      %277 = sbr.rel (0) target = $region137
    $region136: #{tpu_custom_call.1} parent=1 // pred_region
      %279 = dma.done [#allocation24], 256
    $region137: #{tpu_custom_call.1} parent=1 // pred_fallthru
      _
    %v281 = vld [vmem:[#allocation2] sm:$0xf]
    %v282 = vpack.c.bf16 %v281, %v281
    %v283 = vld [vmem:[%s1] sm:$0xf]
    %v284 = vlaneseq
    %v285 = vand.u32 %v284, 127
    %v286 = vcvt.s32.f32 %v285
    %vm287 = vcmask 11264
    %v288 = vsel %vm287, %v283, -inf
    %289 = vmax.xlane.f32.xlu0 %v288
    %v290 = vpop.xlane.xlu0 %289
    %vm291 = vcmp.eq.f32.partialorder %v283, %v290
    %v292 = vsel %vm291, %v286, 2.0
    %v293 = vsel %vm287, %v292, inf
    %294 = vmin.xlane.f32.xlu0 %v293
    %v295 = vpop.xlane.xlu0 %294
    %vm296 = vcmp.eq.f32.partialorder %v286, %v295
    %v297 = vsel %vm296, 1, 0
    %v298 = vcvt.s32.f32 %v297
    %v299 = vld [vmem:[#allocation7] sm:$0xf]
    %s300 = scalar_lea.vmem [#allocation7], 4
    %v301 = vld [vmem:[%s300] sm:$0xf]
    %303 = vset.pattern.permute.xlu0 0
    %304 = vperm.xlu0 %303, %v298
    %v305 = vpop.permute.xlu0 %304
    %v307 = vmul.f32 %v305, %v299
    %308 = vset.pattern.permute.xlu0 1
    %309 = vperm.xlu0 %308, %v298
    %v310 = vpop.permute.xlu0 %309
    %v312 = vmul.f32 %v310, %v301
    %v313 = vadd.f32 %v307, %v312
    %v314 = vld [vmem:[#allocation5] sm:$0xf]
    %s315 = scalar_lea.vmem [#allocation5], 4
    %v316 = vld [vmem:[%s315] sm:$0xf]
    %s317 = scalar_lea.vmem [#allocation5], 8
    %v318 = vld [vmem:[%s317] sm:$0xf]
    %s319 = scalar_lea.vmem [#allocation5], 12
    %v320 = vld [vmem:[%s319] sm:$0xf]
    %s321 = scalar_lea.vmem [#allocation5], 16
    %v322 = vld [vmem:[%s321] sm:$0xf]
    %s323 = scalar_lea.vmem [#allocation5], 20
    %v324 = vld [vmem:[%s323] sm:$0xf]
    %s325 = scalar_lea.vmem [#allocation5], 24
    %v326 = vld [vmem:[%s325] sm:$0xf]
    %s327 = scalar_lea.vmem [#allocation5], 28
    %v328 = vld [vmem:[%s327] sm:$0xf]
    %v329 = vld [vmem:[#allocation10] sm:$0xf]
    %v330 = vld [vmem:[#allocation10 + $0x4] sm:$0xf]
    %v331 = vld [vmem:[#allocation10 + $0x8] sm:$0xf]
    %v332 = vld [vmem:[#allocation10 + $0xc] sm:$0xf]
    %v333 = vpack.c.bf16 %v313, %v313
    %v334 = vld [vmem:[#allocation11] sm:$0xf]
    %v335 = vld [vmem:[#allocation11 + $0x4] sm:$0xf]
    %v336 = vld [vmem:[#allocation11 + $0x8] sm:$0xf]
    %v337 = vld [vmem:[#allocation11 + $0xc] sm:$0xf]
    %v342 = vunpack.c.l.b16 %v334
    %v343 = vunpack.c.l.b16 %v335
    %v344 = vunpack.c.l.b16 %v336
    %v345 = vunpack.c.l.b16 %v337
    %v346 = vpack.c.b16 %v343, %v342
    %v347 = vpack.c.b16 %v345, %v344
    %vm350 = vcmask 261120
    %v352 = vsel %vm350, %v333, 0
    %354 = vmatpush.bf16.msra.mxu0 0
    %355 = vmatpush.bf16.msra.mxu0 0
    %356 = vmatpush.bf16.msra.mxu0 0
    %357 = vmatpush.bf16.msra.mxu0 0
    %358 = vmatpush.bf16.msra.mxu0 0
    %359 = vmatpush.bf16.msra.mxu0 0
    %360 = vmatpush.bf16.msra.mxu0 %v347
    %361 = vmatpush.bf16.msra.mxu0 %v346
    %362 = vmatmul.bf16.gmra.mxu0 %v352
    %v363 = vpop.f32.mrf.mxu0
    %v364 = vadd.f32 0.0, %v363
    %v365 = vpop.f32.mrf.mxu0
    %366 = vdwg.mxu0
    %v371 = vunpack.c.l.b16 %v329
    %v372 = vunpack.c.l.b16 %v330
    %v373 = vunpack.c.l.b16 %v331
    %v374 = vunpack.c.l.b16 %v332
    %v375 = vpack.c.b16 %v372, %v371
    %v376 = vpack.c.b16 %v374, %v373
    %v380 = vsel %vm350, %v282, 0
    %382 = vmatpush.bf16.msra.mxu0 0
    %383 = vmatpush.bf16.msra.mxu0 0
    %384 = vmatpush.bf16.msra.mxu0 0
    %385 = vmatpush.bf16.msra.mxu0 0
    %386 = vmatpush.bf16.msra.mxu0 0
    %387 = vmatpush.bf16.msra.mxu0 0
    %388 = vmatpush.bf16.msra.mxu0 %v376
    %389 = vmatpush.bf16.msra.mxu0 %v375
    %390 = vmatmul.bf16.gmra.mxu0 %v380
    %v391 = vpop.f32.mrf.mxu0
    %v392 = vadd.f32 %v364, %v391
    %v393 = vpop.f32.mrf.mxu0
    %394 = vdwg.mxu0
    %v395 = vld [vmem:[#allocation14] sm:$0x1]
    %v397 = vperm.slane %v395, 0
    %v399 = vadd.f32 %v392, %v397
    %v400 = vld [vmem:[#allocation13] sm:$0xf]
    %v401 = vld [vmem:[#allocation13 + $0x4] sm:$0xf]
    %v402 = vld [vmem:[#allocation13 + $0x8] sm:$0xf]
    %v403 = vld [vmem:[#allocation13 + $0xc] sm:$0xf]
    %v404 = vld [vmem:[#allocation16] sm:$0x1]
    %v405 = vpack.c.bf16 %v328, %v328
    %v407 = vperm.slane %v404, 0
    %v413 = vunpack.c.l.b16 %v400
    %v414 = vunpack.c.l.b16 %v401
    %v415 = vunpack.c.l.b16 %v402
    %v416 = vunpack.c.l.b16 %v403
    %v417 = vpack.c.b16 %v414, %v413
    %v418 = vpack.c.b16 %v416, %v415
    %v422 = vsel %vm350, %v405, 0
    %424 = vmatpush.bf16.msra.mxu0 0
    %425 = vmatpush.bf16.msra.mxu0 0
    %426 = vmatpush.bf16.msra.mxu0 0
    %427 = vmatpush.bf16.msra.mxu0 0
    %428 = vmatpush.bf16.msra.mxu0 0
    %429 = vmatpush.bf16.msra.mxu0 0
    %430 = vmatpush.bf16.msra.mxu0 %v418
    %431 = vmatpush.bf16.msra.mxu0 %v417
    %432 = vmatmul.bf16.gmra.mxu0 %v422
    %v433 = vpop.f32.mrf.mxu0
    %v434 = vadd.f32 %v407, %v433
    %v435 = vpop.f32.mrf.mxu0
    %436 = vdwg.mxu0
    %v437 = vadd.f32 %v399, %v434
    %v438 = vxor.u32 %v437, 2147483648
    %v439 = vmul.f32 %v438, 1.442695
    %v440 = vpow.pop %v439
    %v441 = vadd.f32 %v440, 1.0
    %v442 = vrcp.pop %v441
    %v443 = vmul.f32 %v441, %v442
    %v444 = vsub.f32 1.0, %v443
    %v445 = vmul.f32 %v442, %v444
    %v446 = vadd.f32 %v442, %v445
    %vm447 = vweird.f32 %v441
    %vm448 = vweird.f32 %v442
    %vm449 = vmor %vm447, %vm448
    %v450 = vsel %vm449, %v442, %v446
    %v451 = vand.u32 2147483647, %v441
    %vm452 = vcmp.eq.f32.partialorder %v451, 8.507059e+37
    %v453 = vand.u32 %v441, 2147483648
    %v454 = vor.u32 1.1754944e-38, %v453
    %v455 = vsel %vm452, %v454, %v450
    %v456 = vmul.f32 1.0, %v455
    %458 = vrot.lane.b32.xlu0 %v434, 64
    %v459 = vpop.permute.xlu0 %458
    %v461 = vmul.f32 %v456, %v459
    %463 = vrot.lane.b32.xlu0 %v461, 64
    %v464 = vpop.permute.xlu0 %463
    %v466 = vadd.f32 %v399, %v464
    %v467 = vtanh.pop %v466
    %v468 = vsub.f32 1.0, %v456
    %470 = vrot.lane.b32.xlu0 %v467, 96
    %v471 = vpop.permute.xlu0 %470
    %v473 = vmul.f32 %v468, %v471
    %475 = vrot.lane.b32.xlu0 %v328, 32
    %v476 = vpop.permute.xlu0 %475
    %v478 = vmul.f32 %v456, %v476
    %v479 = vadd.f32 %v473, %v478
    %v480 = vld [vmem:[#allocation17] sm:$0x1]
    %v482 = vperm.slane %v480, 0
    %v484 = vmul.f32 %v314, %v482
    %vm485 = vcmask 257024
    %v486 = vsel %vm485, %v484, 0.0
    %487 = vadd.xlane.f32.xlu0 %v486
    %v488 = vpop.xlane.xlu0 %487
    %v489 = vmul.f32 %v316, %v482
    %v490 = vsel %vm485, %v489, 0.0
    %491 = vadd.xlane.f32.xlu0 %v490
    %v492 = vpop.xlane.xlu0 %491
    %v493 = vmul.f32 %v318, %v482
    %v494 = vsel %vm485, %v493, 0.0
    %495 = vadd.xlane.f32.xlu0 %v494
    %v496 = vpop.xlane.xlu0 %495
    %v497 = vmul.f32 %v320, %v482
    %v498 = vsel %vm485, %v497, 0.0
    %499 = vadd.xlane.f32.xlu0 %v498
    %v500 = vpop.xlane.xlu0 %499
    %v501 = vmul.f32 %v322, %v482
    %v502 = vsel %vm485, %v501, 0.0
    %503 = vadd.xlane.f32.xlu0 %v502
    %v504 = vpop.xlane.xlu0 %503
    %v505 = vmul.f32 %v324, %v482
    %v506 = vsel %vm485, %v505, 0.0
    %507 = vadd.xlane.f32.xlu0 %v506
    %v508 = vpop.xlane.xlu0 %507
    %v509 = vmul.f32 %v326, %v482
    %v510 = vsel %vm485, %v509, 0.0
    %511 = vadd.xlane.f32.xlu0 %v510
    %v512 = vpop.xlane.xlu0 %511
    %v513 = vmul.f32 %v328, %v482
    %v514 = vsel %vm485, %v513, 0.0
    %515 = vadd.xlane.f32.xlu0 %v514
    %v516 = vpop.xlane.xlu0 %515
    %v517 = vmax.f32 %v488, %v492
    %v518 = vmax.f32 %v517, %v496
    %v519 = vmax.f32 %v518, %v500
    %v520 = vmax.f32 %v519, %v504
    %v521 = vmax.f32 %v520, %v508
    %v522 = vmax.f32 %v521, %v512
    %v523 = vmax.f32 %v522, %v516
    %v524 = vsub.f32 %v488, %v523
    %v525 = vmul.f32 %v524, 1.442695
    %v526 = vpow.pop %v525
    %v527 = vsub.f32 %v492, %v523
    %v528 = vmul.f32 %v527, 1.442695
    %v529 = vpow.pop %v528
    %v530 = vsub.f32 %v496, %v523
    %v531 = vmul.f32 %v530, 1.442695
    %v532 = vpow.pop %v531
    %v533 = vsub.f32 %v500, %v523
    %v534 = vmul.f32 %v533, 1.442695
    %v535 = vpow.pop %v534
    %v536 = vsub.f32 %v504, %v523
    %v537 = vmul.f32 %v536, 1.442695
    %v538 = vpow.pop %v537
    %v539 = vsub.f32 %v508, %v523
    %v540 = vmul.f32 %v539, 1.442695
    %v541 = vpow.pop %v540
    %v542 = vsub.f32 %v512, %v523
    %v543 = vmul.f32 %v542, 1.442695
    %v544 = vpow.pop %v543
    %v545 = vsub.f32 %v516, %v523
    %v546 = vmul.f32 %v545, 1.442695
    %v547 = vpow.pop %v546
    %v548 = vadd.f32 %v526, %v529
    %v549 = vadd.f32 %v548, %v532
    %v550 = vadd.f32 %v549, %v535
    %v551 = vadd.f32 %v550, %v538
    %v552 = vadd.f32 %v551, %v541
    %v553 = vadd.f32 %v552, %v544
    %v554 = vadd.f32 %v553, %v547
    %v555 = vrcp.pop %v554
    %v556 = vmul.f32 %v554, %v555
    %v557 = vsub.f32 1.0, %v556
    %v558 = vmul.f32 %v555, %v557
    %v559 = vadd.f32 %v555, %v558
    %vm560 = vweird.f32 %v554
    %vm561 = vweird.f32 %v555
    %vm562 = vmor %vm560, %vm561
    %v563 = vsel %vm562, %v555, %v559
    %v564 = vand.u32 2147483647, %v554
    %vm565 = vcmp.eq.f32.partialorder %v564, 8.507059e+37
    %v566 = vand.u32 %v554, 2147483648
    %v567 = vor.u32 1.1754944e-38, %v566
    %v568 = vsel %vm565, %v567, %v563
    %v569 = vmul.f32 1.0, %v568
    %v570 = vmul.f32 %v526, %v569
    %vm571 = vcmask 3072
    %572 = vst.msk [vmem:[#allocation29] sm:$0xf] %vm571, %v570
    %v573 = vmul.f32 %v570, %v314
    %v574 = vadd.f32 %v573, 0.0
    %v575 = vmul.f32 %v529, %v569
    %vm576 = vcmask 11272
    %577 = vst.msk [vmem:[#allocation29] sm:$0xf] %vm576, %v575
    %v578 = vmul.f32 %v575, %v316
    %v579 = vadd.f32 %v574, %v578
    %v580 = vmul.f32 %v532, %v569
    %vm581 = vcmask 19472
    %582 = vst.msk [vmem:[#allocation29] sm:$0xf] %vm581, %v580
    %v583 = vmul.f32 %v580, %v318
    %v584 = vadd.f32 %v579, %v583
    %v585 = vmul.f32 %v535, %v569
    %vm586 = vcmask 27672
    %587 = vst.msk [vmem:[#allocation29] sm:$0xf] %vm586, %v585
    %v588 = vmul.f32 %v585, %v320
    %v589 = vadd.f32 %v584, %v588
    %v590 = vmul.f32 %v538, %v569
    %vm591 = vcmask 35872
    %592 = vst.msk [vmem:[#allocation29] sm:$0xf] %vm591, %v590
    %v593 = vmul.f32 %v590, %v322
    %v594 = vadd.f32 %v589, %v593
    %v595 = vmul.f32 %v541, %v569
    %vm596 = vcmask 44072
    %597 = vst.msk [vmem:[#allocation29] sm:$0xf] %vm596, %v595
    %v598 = vmul.f32 %v595, %v324
    %v599 = vadd.f32 %v594, %v598
    %v600 = vmul.f32 %v544, %v569
    %vm601 = vcmask 52272
    %602 = vst.msk [vmem:[#allocation29] sm:$0xf] %vm601, %v600
    %v603 = vmul.f32 %v600, %v326
    %v604 = vadd.f32 %v599, %v603
    %v605 = vmul.f32 %v547, %v569
    %vm606 = vcmask 60472
    %607 = vst.msk [vmem:[#allocation29] sm:$0xf] %vm606, %v605
    %v608 = vmul.f32 %v605, %v328
    %v609 = vadd.f32 %v604, %v608
    %v610 = vld [vmem:[%s11] sm:$0xf]
    %v611 = vld [vmem:[%s11 + $0x4] sm:$0xf]
    %v612 = vld [vmem:[%s11 + $0x8] sm:$0xf]
    %v613 = vld [vmem:[%s11 + $0xc] sm:$0xf]
    %v614 = vpack.c.bf16 %v609, %v609
    %v615 = vld [vmem:[#allocation19] sm:$0xf]
    %v616 = vld [vmem:[#allocation19 + $0x4] sm:$0xf]
    %v617 = vld [vmem:[#allocation19 + $0x8] sm:$0xf]
    %v618 = vld [vmem:[#allocation19 + $0xc] sm:$0xf]
    %v623 = vunpack.c.l.b16 %v615
    %v624 = vunpack.c.l.b16 %v616
    %v625 = vunpack.c.l.b16 %v617
    %v626 = vunpack.c.l.b16 %v618
    %v627 = vpack.c.b16 %v624, %v623
    %v628 = vpack.c.b16 %v626, %v625
    %v632 = vsel %vm350, %v614, 0
    %634 = vmatpush.bf16.msra.mxu0 0
    %635 = vmatpush.bf16.msra.mxu0 0
    %636 = vmatpush.bf16.msra.mxu0 0
    %637 = vmatpush.bf16.msra.mxu0 0
    %638 = vmatpush.bf16.msra.mxu0 0
    %639 = vmatpush.bf16.msra.mxu0 0
    %640 = vmatpush.bf16.msra.mxu0 %v628
    %641 = vmatpush.bf16.msra.mxu0 %v627
    %642 = vmatmul.bf16.gmra.mxu0 %v632
    %v643 = vpop.f32.mrf.mxu0
    %v644 = vadd.f32 0.0, %v643
    %v645 = vpop.f32.mrf.mxu0
    %646 = vdwg.mxu0
    %v651 = vunpack.c.l.b16 %v610
    %v652 = vunpack.c.l.b16 %v611
    %v653 = vunpack.c.l.b16 %v612
    %v654 = vunpack.c.l.b16 %v613
    %v655 = vpack.c.b16 %v652, %v651
    %v656 = vpack.c.b16 %v654, %v653
    %659 = vmatpush.bf16.msra.mxu0 0
    %660 = vmatpush.bf16.msra.mxu0 0
    %661 = vmatpush.bf16.msra.mxu0 0
    %662 = vmatpush.bf16.msra.mxu0 0
    %663 = vmatpush.bf16.msra.mxu0 0
    %664 = vmatpush.bf16.msra.mxu0 0
    %665 = vmatpush.bf16.msra.mxu0 %v656
    %666 = vmatpush.bf16.msra.mxu0 %v655
    %667 = vmatmul.bf16.gmra.mxu0 %v380
    %v668 = vpop.f32.mrf.mxu0
    %v669 = vadd.f32 %v644, %v668
    %v670 = vpop.f32.mrf.mxu0
    %671 = vdwg.mxu0
    %v672 = vld [vmem:[%s14] sm:$0x1]
    %v674 = vperm.slane %v672, 0
    %v676 = vadd.f32 %v669, %v674
    %v677 = vld [vmem:[#allocation20] sm:$0xf]
    %v678 = vld [vmem:[#allocation20 + $0x4] sm:$0xf]
    %v679 = vld [vmem:[#allocation20 + $0x8] sm:$0xf]
    %v680 = vld [vmem:[#allocation20 + $0xc] sm:$0xf]
    %v681 = vld [vmem:[%s15] sm:$0x1]
    %v682 = vpack.c.bf16 %v299, %v299
    %v684 = vperm.slane %v681, 0
    %v690 = vunpack.c.l.b16 %v677
    %v691 = vunpack.c.l.b16 %v678
    %v692 = vunpack.c.l.b16 %v679
    %v693 = vunpack.c.l.b16 %v680
    %v694 = vpack.c.b16 %v691, %v690
    %v695 = vpack.c.b16 %v693, %v692
    %v699 = vsel %vm350, %v682, 0
    %701 = vmatpush.bf16.msra.mxu0 0
    %702 = vmatpush.bf16.msra.mxu0 0
    %703 = vmatpush.bf16.msra.mxu0 0
    %704 = vmatpush.bf16.msra.mxu0 0
    %705 = vmatpush.bf16.msra.mxu0 0
    %706 = vmatpush.bf16.msra.mxu0 0
    %707 = vmatpush.bf16.msra.mxu0 %v695
    %708 = vmatpush.bf16.msra.mxu0 %v694
    %709 = vmatmul.bf16.gmra.mxu0 %v699
    %v710 = vpop.f32.mrf.mxu0
    %v711 = vadd.f32 %v684, %v710
    %v712 = vpop.f32.mrf.mxu0
    %713 = vdwg.mxu0
    %v714 = vadd.f32 %v676, %v711
    %v715 = vxor.u32 %v714, 2147483648
    %v716 = vmul.f32 %v715, 1.442695
    %v717 = vpow.pop %v716
    %v718 = vadd.f32 %v717, 1.0
    %v719 = vrcp.pop %v718
    %v720 = vmul.f32 %v718, %v719
    %v721 = vsub.f32 1.0, %v720
    %v722 = vmul.f32 %v719, %v721
    %v723 = vadd.f32 %v719, %v722
    %vm724 = vweird.f32 %v718
    %vm725 = vweird.f32 %v719
    %vm726 = vmor %vm724, %vm725
    %v727 = vsel %vm726, %v719, %v723
    %v728 = vand.u32 2147483647, %v718
    %vm729 = vcmp.eq.f32.partialorder %v728, 8.507059e+37
    %v730 = vand.u32 %v718, 2147483648
    %v731 = vor.u32 1.1754944e-38, %v730
    %v732 = vsel %vm729, %v731, %v727
    %v733 = vmul.f32 1.0, %v732
    %735 = vrot.lane.b32.xlu0 %v711, 64
    %v736 = vpop.permute.xlu0 %735
    %v738 = vmul.f32 %v733, %v736
    %740 = vrot.lane.b32.xlu0 %v738, 64
    %v741 = vpop.permute.xlu0 %740
    %v743 = vadd.f32 %v676, %v741
    %v744 = vtanh.pop %v743
    %v745 = vsub.f32 1.0, %v733
    %747 = vrot.lane.b32.xlu0 %v744, 96
    %v748 = vpop.permute.xlu0 %747
    %v750 = vmul.f32 %v745, %v748
    %752 = vrot.lane.b32.xlu0 %v299, 32
    %v753 = vpop.permute.xlu0 %752
    %v755 = vmul.f32 %v733, %v753
    %v756 = vadd.f32 %v750, %v755
    %v757 = vsub.f32 1.0, %v283
    %759 = vset.pattern.permute.xlu0 0
    %760 = vperm.xlu0 %759, %v757
    %v761 = vpop.permute.xlu0 %760
    %v763 = vmul.f32 %v299, %v761
    %765 = vset.pattern.permute.xlu0 0
    %766 = vperm.xlu0 %765, %v283
    %v767 = vpop.permute.xlu0 %766
    %v769 = vmul.f32 %v756, %v767
    %771 = vrot.lane.b32.xlu0 %v769, 96
    %v772 = vpop.permute.xlu0 %771
    %v774 = vadd.f32 %v763, %v772
    %775 = vst.msk [vmem:[#allocation26] sm:$0xf] %vm485, %v774
    %v776 = vmul.f32 %v305, %v774
    %v777 = vadd.f32 %v776, 0.0
    %v778 = vpack.c.bf16 %v301, %v301
    %v780 = vsel %vm350, %v778, 0
    %782 = vmatpush.bf16.msra.mxu0 0
    %783 = vmatpush.bf16.msra.mxu0 0
    %784 = vmatpush.bf16.msra.mxu0 0
    %785 = vmatpush.bf16.msra.mxu0 0
    %786 = vmatpush.bf16.msra.mxu0 0
    %787 = vmatpush.bf16.msra.mxu0 0
    %788 = vmatpush.bf16.msra.mxu0 %v695
    %789 = vmatpush.bf16.msra.mxu0 %v694
    %790 = vmatmul.bf16.gmra.mxu0 %v780
    %v791 = vpop.f32.mrf.mxu0
    %v792 = vadd.f32 %v684, %v791
    %v793 = vpop.f32.mrf.mxu0
    %794 = vdwg.mxu0
    %v795 = vadd.f32 %v676, %v792
    %v796 = vxor.u32 %v795, 2147483648
    %v797 = vmul.f32 %v796, 1.442695
    %v798 = vpow.pop %v797
    %v799 = vadd.f32 %v798, 1.0
    %v800 = vrcp.pop %v799
    %v801 = vmul.f32 %v799, %v800
    %v802 = vsub.f32 1.0, %v801
    %v803 = vmul.f32 %v800, %v802
    %v804 = vadd.f32 %v800, %v803
    %vm805 = vweird.f32 %v799
    %vm806 = vweird.f32 %v800
    %vm807 = vmor %vm805, %vm806
    %v808 = vsel %vm807, %v800, %v804
    %v809 = vand.u32 2147483647, %v799
    %vm810 = vcmp.eq.f32.partialorder %v809, 8.507059e+37
    %v811 = vand.u32 %v799, 2147483648
    %v812 = vor.u32 1.1754944e-38, %v811
    %v813 = vsel %vm810, %v812, %v808
    %v814 = vmul.f32 1.0, %v813
    %816 = vrot.lane.b32.xlu0 %v792, 64
    %v817 = vpop.permute.xlu0 %816
    %v819 = vmul.f32 %v814, %v817
    %821 = vrot.lane.b32.xlu0 %v819, 64
    %v822 = vpop.permute.xlu0 %821
    %v824 = vadd.f32 %v676, %v822
    %v825 = vtanh.pop %v824
    %v826 = vsub.f32 1.0, %v814
    %828 = vrot.lane.b32.xlu0 %v825, 96
    %v829 = vpop.permute.xlu0 %828
    %v831 = vmul.f32 %v826, %v829
    %833 = vrot.lane.b32.xlu0 %v301, 32
    %v834 = vpop.permute.xlu0 %833
    %v836 = vmul.f32 %v814, %v834
    %v837 = vadd.f32 %v831, %v836
    %838 = vset.pattern.permute.xlu0 1
    %839 = vperm.xlu0 %838, %v757
    %v840 = vpop.permute.xlu0 %839
    %v842 = vmul.f32 %v301, %v840
    %843 = vset.pattern.permute.xlu0 1
    %844 = vperm.xlu0 %843, %v283
    %v845 = vpop.permute.xlu0 %844
    %v847 = vmul.f32 %v837, %v845
    %849 = vrot.lane.b32.xlu0 %v847, 96
    %v850 = vpop.permute.xlu0 %849
    %v852 = vadd.f32 %v842, %v850
    %s853 = scalar_lea.vmem [#allocation26], 4
    %854 = vst.msk [vmem:[%s853] sm:$0xf] %vm485, %v852
    %v855 = vmul.f32 %v310, %v852
    %v856 = vadd.f32 %v777, %v855
    %v857 = vpack.c.bf16 %v856, %v856
    %v858 = vld [vmem:[#allocation22] sm:$0xf]
    %v859 = vld [vmem:[#allocation22 + $0x4] sm:$0xf]
    %v860 = vld [vmem:[#allocation22 + $0x8] sm:$0xf]
    %v861 = vld [vmem:[#allocation22 + $0xc] sm:$0xf]
    %v862 = vld [vmem:[%s18] sm:$0x1]
    %v864 = vperm.slane %v862, 0
    %v870 = vunpack.c.l.b16 %v858
    %v871 = vunpack.c.l.b16 %v859
    %v872 = vunpack.c.l.b16 %v860
    %v873 = vunpack.c.l.b16 %v861
    %v874 = vpack.c.b16 %v871, %v870
    %v875 = vpack.c.b16 %v873, %v872
    %v879 = vsel %vm350, %v857, 0
    %881 = vmatpush.bf16.msra.mxu0 0
    %882 = vmatpush.bf16.msra.mxu0 0
    %883 = vmatpush.bf16.msra.mxu0 0
    %884 = vmatpush.bf16.msra.mxu0 0
    %885 = vmatpush.bf16.msra.mxu0 0
    %886 = vmatpush.bf16.msra.mxu0 0
    %887 = vmatpush.bf16.msra.mxu0 %v875
    %888 = vmatpush.bf16.msra.mxu0 %v874
    %889 = vmatmul.bf16.gmra.mxu0 %v879
    %v890 = vpop.f32.mrf.mxu0
    %v891 = vadd.f32 %v864, %v890
    %v892 = vpop.f32.mrf.mxu0
    %893 = vdwg.mxu0
    %v894 = vld [vmem:[#allocation8] sm:$0xf]
    %v895 = vld [vmem:[#allocation23] sm:$0xf]
    %v896 = vld [vmem:[#allocation23 + $0x4] sm:$0xf]
    %v897 = vld [vmem:[#allocation23 + $0x8] sm:$0xf]
    %v898 = vld [vmem:[#allocation23 + $0xc] sm:$0xf]
    %v899 = vld [vmem:[%s19] sm:$0x1]
    %v900 = vpack.c.bf16 %v894, %v894
    %v902 = vperm.slane %v899, 0
    %v908 = vunpack.c.l.b16 %v895
    %v909 = vunpack.c.l.b16 %v896
    %v910 = vunpack.c.l.b16 %v897
    %v911 = vunpack.c.l.b16 %v898
    %v912 = vpack.c.b16 %v909, %v908
    %v913 = vpack.c.b16 %v911, %v910
    %v917 = vsel %vm350, %v900, 0
    %919 = vmatpush.bf16.msra.mxu0 0
    %920 = vmatpush.bf16.msra.mxu0 0
    %921 = vmatpush.bf16.msra.mxu0 0
    %922 = vmatpush.bf16.msra.mxu0 0
    %923 = vmatpush.bf16.msra.mxu0 0
    %924 = vmatpush.bf16.msra.mxu0 0
    %925 = vmatpush.bf16.msra.mxu0 %v913
    %926 = vmatpush.bf16.msra.mxu0 %v912
    %927 = vmatmul.bf16.gmra.mxu0 %v917
    %v928 = vpop.f32.mrf.mxu0
    %v929 = vadd.f32 %v902, %v928
    %v930 = vpop.f32.mrf.mxu0
    %931 = vdwg.mxu0
    %v932 = vadd.f32 %v891, %v929
    %v933 = vxor.u32 %v932, 2147483648
    %v934 = vmul.f32 %v933, 1.442695
    %v935 = vpow.pop %v934
    %v936 = vadd.f32 %v935, 1.0
    %v937 = vrcp.pop %v936
    %v938 = vmul.f32 %v936, %v937
    %v939 = vsub.f32 1.0, %v938
    %v940 = vmul.f32 %v937, %v939
    %v941 = vadd.f32 %v937, %v940
    %vm942 = vweird.f32 %v936
    %vm943 = vweird.f32 %v937
    %vm944 = vmor %vm942, %vm943
    %v945 = vsel %vm944, %v937, %v941
    %v946 = vand.u32 2147483647, %v936
    %vm947 = vcmp.eq.f32.partialorder %v946, 8.507059e+37
    %v948 = vand.u32 %v936, 2147483648
    %v949 = vor.u32 1.1754944e-38, %v948
    %v950 = vsel %vm947, %v949, %v945
    %v951 = vmul.f32 1.0, %v950
    %953 = vrot.lane.b32.xlu0 %v929, 64
    %v954 = vpop.permute.xlu0 %953
    %v956 = vmul.f32 %v951, %v954
    %958 = vrot.lane.b32.xlu0 %v956, 64
    %v959 = vpop.permute.xlu0 %958
    %v961 = vadd.f32 %v891, %v959
    %v962 = vtanh.pop %v961
    %v963 = vsub.f32 1.0, %v951
    %965 = vrot.lane.b32.xlu0 %v962, 96
    %v966 = vpop.permute.xlu0 %965
    %v968 = vmul.f32 %v963, %v966
    %970 = vrot.lane.b32.xlu0 %v894, 32
    %v971 = vpop.permute.xlu0 %970
    %v973 = vmul.f32 %v951, %v971
    %v974 = vadd.f32 %v968, %v973
    %976 = vrot.lane.b32.xlu0 %v479, 96
    %v977 = vpop.permute.xlu0 %976
    %979 = vst.msk [vmem:[#allocation25] sm:$0xf] %vm485, %v977
    %981 = vrot.lane.b32.xlu0 %v974, 96
    %v982 = vpop.permute.xlu0 %981
    %984 = vst.msk [vmem:[#allocation28] sm:$0xf] %vm485, %v982
    // Predicated region
    $region138: #{tpu_custom_call.1} parent=1 // pred_check
      _
    $region139: #{tpu_custom_call.1} parent=1 // pred_check_branch
      %986 = sbr.rel (0) target = $region141
    $region140: #{tpu_custom_call.1} parent=1 // pred_region
      %988 = vsyncadd [#allocation4], 0
      %s990 = sshll.u32 [#allocation25], 4
      %s991 = int_to_ptr.vmem [resolvable:$true] %s990
      %s992 = sshll.u32 %s20, 4
      %s993 = int_to_ptr.hbm [resolvable:$true] %s992
      %995 = dma.vmem_to_hbm [thread:$0]  %s991, 64, %s993, [#allocation4]
    $region141: #{tpu_custom_call.1} parent=1 // pred_fallthru
      _
    // Predicated region
    $region142: #{tpu_custom_call.1} parent=1 // pred_check
      _
    $region143: #{tpu_custom_call.1} parent=1 // pred_check_branch
      %997 = sbr.rel (0) target = $region145
    $region144: #{tpu_custom_call.1} parent=1 // pred_region
      %999 = vsyncadd [#allocation27], 0
      %s1000 = sshll.u32 [#allocation26], 4
      %s1001 = int_to_ptr.vmem [resolvable:$true] %s1000
      %s1002 = sshll.u32 %s21, 4
      %s1003 = int_to_ptr.hbm [resolvable:$true] %s1002
      %1008 = dma.vmem_to_hbm [thread:$0]  %s1001, 128, %s1003, [#allocation27], 64, 64, 4
    $region145: #{tpu_custom_call.1} parent=1 // pred_fallthru
      _
    // Predicated region
    $region146: #{tpu_custom_call.1} parent=1 // pred_check
      _
    $region147: #{tpu_custom_call.1} parent=1 // pred_check_branch
      %1010 = sbr.rel (0) target = $region149
    $region148: #{tpu_custom_call.1} parent=1 // pred_region
      %1012 = vsyncadd [#allocation27], 0
      %s1014 = sshll.u32 [#allocation28], 4
      %s1015 = int_to_ptr.vmem [resolvable:$true] %s1014
      %s1016 = sshll.u32 %s22, 4
      %s1017 = int_to_ptr.hbm [resolvable:$true] %s1016
      %1019 = dma.vmem_to_hbm [thread:$0]  %s1015, 64, %s1017, [#allocation27]
    $region149: #{tpu_custom_call.1} parent=1 // pred_fallthru
      _
    // Predicated region
    $region150: #{tpu_custom_call.1} parent=1 // pred_check
      _
    $region151: #{tpu_custom_call.1} parent=1 // pred_check_branch
      %1021 = sbr.rel (0) target = $region153
    $region152: #{tpu_custom_call.1} parent=1 // pred_region
      %1023 = vsyncadd [#allocation30], 0
      %s1025 = sshll.u32 [#allocation29], 4
      %s1026 = int_to_ptr.vmem [resolvable:$true] %s1025
      %s1027 = sshll.u32 %s23, 4
      %s1028 = int_to_ptr.hbm [resolvable:$true] %s1027
      %1030 = dma.vmem_to_hbm [thread:$0]  %s1026, 64, %s1028, [#allocation30]
    $region153: #{tpu_custom_call.1} parent=1 // pred_fallthru
      _
    // Predicated region
    $region154: #{tpu_custom_call.1} parent=1 // pred_check
      _
    $region155: #{tpu_custom_call.1} parent=1 // pred_check_branch
      %1032 = sbr.rel (0) target = $region157
    $region156: #{tpu_custom_call.1} parent=1 // pred_region
      %1034 = dma.done [#allocation4], 64
    $region157: #{tpu_custom_call.1} parent=1 // pred_fallthru
      _
    // Predicated region
    $region158: #{tpu_custom_call.1} parent=1 // pred_check
      _
    $region159: #{tpu_custom_call.1} parent=1 // pred_check_branch
      %1036 = sbr.rel (0) target = $region161
    $region160: #{tpu_custom_call.1} parent=1 // pred_region
      %1038 = dma.done [#allocation27], 128
    $region161: #{tpu_custom_call.1} parent=1 // pred_fallthru
      _
    // Predicated region
    $region162: #{tpu_custom_call.1} parent=1 // pred_check
      _
    $region163: #{tpu_custom_call.1} parent=1 // pred_check_branch
      %1040 = sbr.rel (0) target = $region165
    $region164: #{tpu_custom_call.1} parent=1 // pred_region
      %1042 = dma.done [#allocation27], 64
    $region165: #{tpu_custom_call.1} parent=1 // pred_fallthru
      _
    // Predicated region
    $region166: #{tpu_custom_call.1} parent=1 // pred_check
      _
    $region167: #{tpu_custom_call.1} parent=1 // pred_check_branch
      %1044 = sbr.rel (0) target = $region169
    $region168: #{tpu_custom_call.1} parent=1 // pred_region
      %1046 = dma.done [#allocation30], 64
    $region169: #{tpu_custom_call.1} parent=1 // pred_fallthru
      _
    %1047 = vsyncpa [#allocation3], 1
    %1048 = vsyncpa [#allocation6], 1
    %1049 = vsyncpa [#allocation9], 1
    %1050 = vsyncpa [#allocation12], 1
    %1051 = vsyncpa [#allocation15], 1
    %1052 = vsyncpa [#allocation18], 1
    %1053 = vsyncpa [#allocation21], 1
    %1054 = vsyncpa [#allocation24], 1
    %1055 = vsyncpa [#allocation4], 1
    %1056 = vsyncpa [#allocation27], 1
    %1057 = vsyncpa [#allocation30], 1

</llo_original>
